<compile_context>
chip_gen: v5e
topology: v5e:2x2
jax: 0.10.0
libtpu: 0.0.40
codegen_flags: <defaults>
</compile_context>

<pallas_src>
import functools

import jax
import jax.numpy as jnp
import numpy as np
from jax.experimental import pallas as pl
from jax.experimental.pallas import tpu as pltpu


def mixvpr_kernel(x_ref, g_ref, be_ref, w1_ref, b1_ref, wr_ref, w2r_ref,
                  wc_ref, bias_ref, out_ref, *, tb, c, hw):
    """One grid step processes `tb` images (tb*c rows of (., HW)).

    x_ref  : (tb*C, HW) f32   input rows (batch folded into M)
    g/be   : (1, HW)    f32   LayerNorm gamma / beta
    w1/b1  : (HW, HW) bf16 / (1, HW) f32    mixer Linear1
    wr     : (HW, R)  bf16   row-projection weight
    w2r    : (HW, R)  bf16   folded  w2 @ wr
    wc     : (C, O)   bf16   channel-projection weight
    bias   : (R, O)   f32    folded bias  bc*colsum(wr) + br + (b2@wr)*colsum(wc)
    out    : (tb, R, O) f32  (L2-normalized over R*O per image)
    """
    x = x_ref[...]                                             # (tb*C, HW) f32

    # ---- LayerNorm (single-pass statistics) + affine ----
    inv_hw = 1.0 / hw
    s1 = jnp.sum(x, axis=-1, keepdims=True)
    s2 = jnp.sum(x * x, axis=-1, keepdims=True)
    mean = s1 * inv_hw
    var = jnp.maximum(s2 * inv_hw - mean * mean, 0.0)
    xn = (x - mean) * jax.lax.rsqrt(var + 1e-5)
    xn = xn * g_ref[...] + be_ref[...]

    # ---- Mixer Linear1 + ReLU ----
    h = jnp.dot(xn.astype(jnp.bfloat16), w1_ref[...],
                preferred_element_type=jnp.float32) + b1_ref[...]
    h = jnp.maximum(h, 0.0)                                    # (tb*C, HW)

    # ---- Folded (Linear2 + residual) @ row projection ----
    #   t = (x + h@w2 + b2) @ wr = x@wr + h@(w2@wr)  (b2-term folded into bias)
    t = (jnp.dot(x.astype(jnp.bfloat16), wr_ref[...],
                 preferred_element_type=jnp.float32)
         + jnp.dot(h.astype(jnp.bfloat16), w2r_ref[...],
                   preferred_element_type=jnp.float32))        # (tb*C, R)
    r = t.shape[-1]

    # ---- Channel projection, merged over the batch tile (single MXU pass,
    #      M = tb*R) ----
    if tb == 1:
        t_wide = t                                             # (C, R)
    else:
        t_wide = jnp.concatenate(
            [t[i * c:(i + 1) * c, :] for i in range(tb)], axis=1)  # (C, tb*R)
    z = jax.lax.dot_general(t_wide.astype(jnp.bfloat16), wc_ref[...],
                            (((0,), (0,)), ((), ())),
                            preferred_element_type=jnp.float32)    # (tb*R, O)
    z3 = z.reshape(tb, r, -1) + bias_ref[...][None]            # (tb, R, O)

    # ---- per-image L2 normalize over all R*O elements (rsqrt + mul) ----
    ss = jnp.sum(jnp.sum(z3 * z3, axis=-1, keepdims=True), axis=1, keepdims=True)
    inv = jax.lax.rsqrt(jnp.maximum(ss, 1e-24))                # == 1/max(||z||, 1e-12)
    out_ref[...] = (z3 * inv).astype(out_ref.dtype)


def _vmem_bytes_estimate(tb, C, HW, O, R):
    """Rough per-step VMEM footprint (bytes) used for tile-size selection."""
    x_block = tb * C * HW * 4                      # f32 input block
    live = 3 * x_block                             # xn, h + bf16 staging (approx)
    weights = (HW * HW * 2                         # w1 (bf16)
               + 2 * HW * R * 2                    # wr, w2r (bf16)
               + C * O * 2                         # wc (bf16)
               + R * O * 4                         # folded bias
               + 3 * HW * 4)                       # gamma, beta, b1
    out_block = tb * R * O * 4
    # x double-buffered; weights counted double-buffered as the worst case.
    return 2 * x_block + live + 2 * weights + 2 * out_block


def mixvpr_forward(x, params, *, tb=None, vmem_budget_bytes=44 * 1024 * 1024):
    """x: (B, C, H, W) float32 -> (B, O*R) float32.  Implements mix_depth=1."""
    g, be, w1, b1, w2, b2, wc, bc, wr, br = params
    B, C, H, W = x.shape
    HW = H * W
    O = wc.shape[1]
    R = wr.shape[1]

    # ---- host-side folds (bf16 weights in HBM; f32 biases) ----
    w1b = w1.astype(jnp.bfloat16)
    wrb = wr.astype(jnp.bfloat16)
    w2r = (w2.astype(jnp.float32) @ wr.astype(jnp.float32)).astype(jnp.bfloat16)
    wcb = wc.astype(jnp.bfloat16)

    colsum_wr = jnp.sum(wr, axis=0)                    # (R,)
    colsum_wc = jnp.sum(wc, axis=0)                    # (O,)
    b2wr = (b2.reshape(1, HW) @ wr).reshape(R)         # (R,)
    bias_ro = (colsum_wr[:, None] * bc[None, :]
               + br[:, None]
               + b2wr[:, None] * colsum_wc[None, :]).astype(jnp.float32)   # (R, O)

    # ---- VMEM-aware batch tile: biggest tb that fits the budget, preferring
    # >= 2 grid steps (feeds both v7x TensorCores on the 'parallel' axis) and a
    # sublane-aligned x block. ----
    if tb is None:
        divisors = [d for d in range(min(B, 8), 0, -1) if B % d == 0]
        feasible = [d for d in divisors
                    if _vmem_bytes_estimate(d, C, HW, O, R) <= vmem_budget_bytes
                    and ((d * C) % 8 == 0 or d == B)]
        multi_step = [d for d in feasible if B // d >= 2]
        tb = (multi_step or feasible or [1])[0]
    assert B % tb == 0

    est = _vmem_bytes_estimate(tb, C, HW, O, R)
    vmem_limit = int(min(100 * 1024 * 1024, max(32 * 1024 * 1024, int(1.3 * est))))

    xf = x.reshape(B * C, HW)
    kernel = functools.partial(mixvpr_kernel, tb=tb, c=C, hw=HW)
    args = (xf, g, be, w1b, b1, wrb, w2r, wcb, bias_ro)

    def make_call(single_buffer_consts):
        const_kw = ({"pipeline_mode": pl.Buffered(1)}
                    if single_buffer_consts else {})

        def const_spec(shp):
            return pl.BlockSpec(shp, lambda b, n=len(shp): (0,) * n, **const_kw)

        return pl.pallas_call(
            kernel,
            out_shape=jax.ShapeDtypeStruct((B, R, O), jnp.float32),
            grid=(B // tb,),
            in_specs=[
                pl.BlockSpec((tb * C, HW), lambda b: (b, 0)),      # x rows
                const_spec((1, HW)), const_spec((1, HW)),          # LN gamma, beta
                const_spec((HW, HW)), const_spec((1, HW)),         # mixer Linear1
                const_spec((HW, R)),                               # wr
                const_spec((HW, R)),                               # folded w2 @ wr
                const_spec((C, O)),                                # wc
                const_spec((R, O)),                                # folded bias
            ],
            out_specs=pl.BlockSpec((tb, R, O), lambda b: (b, 0, 0)),
            compiler_params=pltpu.CompilerParams(
                dimension_semantics=("parallel",),
                vmem_limit_bytes=vmem_limit,
            ),
        )

    try:
        # Grid-invariant operands single-buffered (constant index maps).
        out = make_call(True)(*args)
    except Exception:
        # pipeline_mode=pl.Buffered(1) unsupported on this jax -> default buffering.
        out = make_call(False)(*args)

    # (B, R, O) -> (B, O, R) -> flatten: matches torch's flatten(1) of (O, R).
    return jnp.transpose(out, (0, 2, 1)).reshape(B, O * R)


def mixvpr_ref(x, params):
    """Pure-JAX f32 reference mirroring the PyTorch forward exactly."""
    g, be, w1, b1, w2, b2, wc, bc, wr, br = params
    B, C, H, W = x.shape
    HW = H * W
    xf = x.reshape(B, C, HW)
    mean = xf.mean(-1, keepdims=True)
    var = ((xf - mean) ** 2).mean(-1, keepdims=True)
    xn = (xf - mean) / jnp.sqrt(var + 1e-5) * g + be
    h = jnp.maximum(xn @ w1 + b1, 0.0)
    xm = xf + h @ w2 + b2                                      # (B, C, HW)
    y = jnp.einsum('bch,co->boh', xm, wc) + bc[None, :, None]  # (B, O, HW)
    z = y @ wr + br                                            # (B, O, R)
    flat = z.reshape(B, -1)
    nrm = jnp.sqrt(jnp.sum(flat * flat, axis=-1, keepdims=True))
    return flat / jnp.maximum(nrm, 1e-12)


if __name__ == "__main__":
    # Small shapes consistent with the module (mix_depth=1, mlp_ratio=1).
    B, C, H, W = 2, 8, 4, 4
    HW = H * W
    OUT_CHANNELS = 16
    OUT_ROWS = 4

    key = jax.random.PRNGKey(0)
    ks = jax.random.split(key, 10)

    def trunc_normal(k, shape, std=0.02):
        return (std * jax.random.truncated_normal(k, -2.0, 2.0, shape)).astype(jnp.float32)

    g = jnp.ones((1, HW), jnp.float32)
    be = jnp.zeros((1, HW), jnp.float32)
    w1 = trunc_normal(ks[0], (HW, HW))
    b1 = trunc_normal(ks[1], (1, HW))          # nonzero to exercise bias paths
    w2 = trunc_normal(ks[2], (HW, HW))
    b2 = trunc_normal(ks[3], (1, HW))          # nonzero to exercise the b2@wr fold
    wc = trunc_normal(ks[4], (C, OUT_CHANNELS))
    bc = trunc_normal(ks[5], (OUT_CHANNELS,))
    wr = trunc_normal(ks[6], (HW, OUT_ROWS))
    br = trunc_normal(ks[7], (OUT_ROWS,))
    params = (g, be, w1, b1, w2, b2, wc, bc, wr, br)

    x = jax.random.normal(ks[8], (B, C, H, W), jnp.float32)

    ref = mixvpr_ref(x, params)

    # Auto tile size (tb=1 here -> 2 grid steps on the 'parallel' axis).
    out = jax.block_until_ready(mixvpr_forward(x, params))
    np.testing.assert_allclose(np.asarray(out), np.asarray(ref), rtol=2e-2, atol=2e-3)
    assert out.shape == (B, OUT_CHANNELS * OUT_ROWS)

    # Also exercise the merged-batch (tb > 1, M = tb*R) channel-projection path.
    out2 = jax.block_until_ready(mixvpr_forward(x, params, tb=2))
    np.testing.assert_allclose(np.asarray(out2), np.asarray(ref), rtol=2e-2, atol=2e-3)

    print("KERNEL_OK")
</pallas_src>

<mosaic_0001>
module attributes {stable_mosaic.version = 11 : i64} {
  func.func @mixvpr_kernel(%arg0: i32, %arg1: memref<8x16xf32, #tpu.memory_space<vmem>>, %arg2: memref<1x16xf32, #tpu.memory_space<vmem>>, %arg3: memref<1x16xf32, #tpu.memory_space<vmem>>, %arg4: memref<16x16xbf16, #tpu.memory_space<vmem>>, %arg5: memref<1x16xf32, #tpu.memory_space<vmem>>, %arg6: memref<16x4xbf16, #tpu.memory_space<vmem>>, %arg7: memref<16x4xbf16, #tpu.memory_space<vmem>>, %arg8: memref<8x16xbf16, #tpu.memory_space<vmem>>, %arg9: memref<4x16xf32, #tpu.memory_space<vmem>>, %arg10: memref<1x4x16xf32, #tpu.memory_space<vmem>>) attributes {dimension_semantics = [#tpu.dimension_semantics<parallel>], iteration_bounds = array<i64: 2>, scalar_prefetch = 0 : i64, scratch_operands = 0 : i64, tpu.core_type = #tpu.core_type<tc>, window_params = [{transform_indices = @transform_0, window_bounds = array<i64: 8, 16>}, {pipeline_mode = #tpu.pipeline_mode<synchronous>, transform_indices = @transform_1, window_bounds = array<i64: 1, 16>}, {pipeline_mode = #tpu.pipeline_mode<synchronous>, transform_indices = @transform_2, window_bounds = array<i64: 1, 16>}, {pipeline_mode = #tpu.pipeline_mode<synchronous>, transform_indices = @transform_3, window_bounds = array<i64: 16, 16>}, {pipeline_mode = #tpu.pipeline_mode<synchronous>, transform_indices = @transform_4, window_bounds = array<i64: 1, 16>}, {pipeline_mode = #tpu.pipeline_mode<synchronous>, transform_indices = @transform_5, window_bounds = array<i64: 16, 4>}, {pipeline_mode = #tpu.pipeline_mode<synchronous>, transform_indices = @transform_6, window_bounds = array<i64: 16, 4>}, {pipeline_mode = #tpu.pipeline_mode<synchronous>, transform_indices = @transform_7, window_bounds = array<i64: 8, 16>}, {pipeline_mode = #tpu.pipeline_mode<synchronous>, transform_indices = @transform_8, window_bounds = array<i64: 4, 16>}, {transform_indices = @transform_9, window_bounds = array<i64: 1, 4, 16>}]} {
    %c0 = arith.constant 0 : index
    %c0_0 = arith.constant 0 : index
    %0 = vector.load %arg1[%c0, %c0_0] : memref<8x16xf32, #tpu.memory_space<vmem>>, vector<8x16xf32>
    %cst = arith.constant dense<0.000000e+00> : vector<8xf32>
    %1 = vector.multi_reduction <add>, %0, %cst [1] : vector<8x16xf32> to vector<8xf32>
    %2 = vector.shape_cast %1 : vector<8xf32> to vector<8x1xf32>
    %3 = arith.mulf %0, %0 : vector<8x16xf32>
    %cst_1 = arith.constant dense<0.000000e+00> : vector<8xf32>
    %4 = vector.multi_reduction <add>, %3, %cst_1 [1] : vector<8x16xf32> to vector<8xf32>
    %5 = vector.shape_cast %4 : vector<8xf32> to vector<8x1xf32>
    %cst_2 = arith.constant 6.250000e-02 : f32
    %6 = vector.broadcast %cst_2 : f32 to vector<8x1xf32>
    %7 = arith.mulf %2, %6 : vector<8x1xf32>
    %cst_3 = arith.constant 6.250000e-02 : f32
    %8 = vector.broadcast %cst_3 : f32 to vector<8x1xf32>
    %9 = arith.mulf %5, %8 : vector<8x1xf32>
    %10 = arith.mulf %7, %7 : vector<8x1xf32>
    %11 = arith.subf %9, %10 : vector<8x1xf32>
    %cst_4 = arith.constant 0.000000e+00 : f32
    %12 = vector.broadcast %cst_4 : f32 to vector<8x1xf32>
    %13 = arith.maximumf %11, %12 : vector<8x1xf32>
    %14 = vector.broadcast %7 : vector<8x1xf32> to vector<8x16xf32>
    %15 = arith.subf %0, %14 : vector<8x16xf32>
    %cst_5 = arith.constant 9.99999974E-6 : f32
    %16 = vector.broadcast %cst_5 : f32 to vector<8x1xf32>
    %17 = arith.addf %13, %16 : vector<8x1xf32>
    %18 = math.rsqrt %17 : vector<8x1xf32>
    %19 = vector.broadcast %18 : vector<8x1xf32> to vector<8x16xf32>
    %20 = arith.mulf %15, %19 : vector<8x16xf32>
    %c0_6 = arith.constant 0 : index
    %c0_7 = arith.constant 0 : index
    %21 = vector.load %arg2[%c0_6, %c0_7] : memref<1x16xf32, #tpu.memory_space<vmem>>, vector<1x16xf32>
    %22 = vector.broadcast %21 : vector<1x16xf32> to vector<8x16xf32>
    %23 = arith.mulf %20, %22 : vector<8x16xf32>
    %c0_8 = arith.constant 0 : index
    %c0_9 = arith.constant 0 : index
    %24 = vector.load %arg3[%c0_8, %c0_9] : memref<1x16xf32, #tpu.memory_space<vmem>>, vector<1x16xf32>
    %25 = vector.broadcast %24 : vector<1x16xf32> to vector<8x16xf32>
    %26 = arith.addf %23, %25 : vector<8x16xf32>
    %27 = arith.truncf %26 : vector<8x16xf32> to vector<8x16xbf16>
    %c0_10 = arith.constant 0 : index
    %c0_11 = arith.constant 0 : index
    %28 = vector.load %arg4[%c0_10, %c0_11] : memref<16x16xbf16, #tpu.memory_space<vmem>>, vector<16x16xbf16>
    %cst_12 = arith.constant dense<0.000000e+00> : vector<8x16xf32>
    %29 = tpu.matmul %27, %28, %cst_12 {dimension_numbers = #tpu.dot_dimension_numbers<[1], [0], [0], [1], [0, 0, 1, 1], [], []>} : vector<8x16xbf16>, vector<16x16xbf16>, vector<8x16xf32> -> vector<8x16xf32>
    %c0_13 = arith.constant 0 : index
    %c0_14 = arith.constant 0 : index
    %30 = vector.load %arg5[%c0_13, %c0_14] : memref<1x16xf32, #tpu.memory_space<vmem>>, vector<1x16xf32>
    %31 = vector.broadcast %30 : vector<1x16xf32> to vector<8x16xf32>
    %32 = arith.addf %29, %31 : vector<8x16xf32>
    %cst_15 = arith.constant 0.000000e+00 : f32
    %33 = vector.broadcast %cst_15 : f32 to vector<8x16xf32>
    %34 = arith.maximumf %32, %33 : vector<8x16xf32>
    %35 = arith.truncf %0 : vector<8x16xf32> to vector<8x16xbf16>
    %c0_16 = arith.constant 0 : index
    %c0_17 = arith.constant 0 : index
    %36 = vector.load %arg6[%c0_16, %c0_17] : memref<16x4xbf16, #tpu.memory_space<vmem>>, vector<16x4xbf16>
    %cst_18 = arith.constant dense<0.000000e+00> : vector<8x4xf32>
    %37 = tpu.matmul %35, %36, %cst_18 {dimension_numbers = #tpu.dot_dimension_numbers<[1], [0], [0], [1], [0, 0, 1, 1], [], []>} : vector<8x16xbf16>, vector<16x4xbf16>, vector<8x4xf32> -> vector<8x4xf32>
    %38 = arith.truncf %34 : vector<8x16xf32> to vector<8x16xbf16>
    %c0_19 = arith.constant 0 : index
    %c0_20 = arith.constant 0 : index
    %39 = vector.load %arg7[%c0_19, %c0_20] : memref<16x4xbf16, #tpu.memory_space<vmem>>, vector<16x4xbf16>
    %cst_21 = arith.constant dense<0.000000e+00> : vector<8x4xf32>
    %40 = tpu.matmul %38, %39, %cst_21 {dimension_numbers = #tpu.dot_dimension_numbers<[1], [0], [0], [1], [0, 0, 1, 1], [], []>} : vector<8x16xbf16>, vector<16x4xbf16>, vector<8x4xf32> -> vector<8x4xf32>
    %41 = arith.addf %37, %40 : vector<8x4xf32>
    %42 = arith.truncf %41 : vector<8x4xf32> to vector<8x4xbf16>
    %c0_22 = arith.constant 0 : index
    %c0_23 = arith.constant 0 : index
    %43 = vector.load %arg8[%c0_22, %c0_23] : memref<8x16xbf16, #tpu.memory_space<vmem>>, vector<8x16xbf16>
    %cst_24 = arith.constant dense<0.000000e+00> : vector<4x16xf32>
    %44 = tpu.matmul %42, %43, %cst_24 {dimension_numbers = #tpu.dot_dimension_numbers<[0], [0], [1], [1], [0, 1, 1, 1], [], []>} : vector<8x4xbf16>, vector<8x16xbf16>, vector<4x16xf32> -> vector<4x16xf32>
    %45 = vector.shape_cast %44 : vector<4x16xf32> to vector<1x4x16xf32>
    %c0_25 = arith.constant 0 : index
    %c0_26 = arith.constant 0 : index
    %46 = vector.load %arg9[%c0_25, %c0_26] : memref<4x16xf32, #tpu.memory_space<vmem>>, vector<4x16xf32>
    %47 = vector.shape_cast %46 : vector<4x16xf32> to vector<1x4x16xf32>
    %48 = arith.addf %45, %47 : vector<1x4x16xf32>
    %49 = arith.mulf %48, %48 : vector<1x4x16xf32>
    %cst_27 = arith.constant dense<0.000000e+00> : vector<1x4xf32>
    %50 = vector.multi_reduction <add>, %49, %cst_27 [2] : vector<1x4x16xf32> to vector<1x4xf32>
    %51 = vector.shape_cast %50 : vector<1x4xf32> to vector<1x4x1xf32>
    %cst_28 = arith.constant dense<0.000000e+00> : vector<1x1xf32>
    %52 = vector.multi_reduction <add>, %51, %cst_28 [1] : vector<1x4x1xf32> to vector<1x1xf32>
    %53 = vector.shape_cast %52 : vector<1x1xf32> to vector<1x1x1xf32>
    %cst_29 = arith.constant 1.000000e-24 : f32
    %54 = vector.broadcast %cst_29 : f32 to vector<1x1x1xf32>
    %55 = arith.maximumf %53, %54 : vector<1x1x1xf32>
    %56 = math.rsqrt %55 : vector<1x1x1xf32>
    %57 = vector.broadcast %56 : vector<1x1x1xf32> to vector<1x4x16xf32>
    %58 = arith.mulf %48, %57 : vector<1x4x16xf32>
    %c0_30 = arith.constant 0 : index
    %c0_31 = arith.constant 0 : index
    %c0_32 = arith.constant 0 : index
    %59 = vector.load %arg10[%c0_30, %c0_31, %c0_32] : memref<1x4x16xf32, #tpu.memory_space<vmem>>, vector<1x4x16xf32>
    tpu.vector_store %arg10[%c0_30, %c0_31, %c0_32], %58 {strides = array<i32>} : memref<1x4x16xf32, #tpu.memory_space<vmem>>, vector<1x4x16xf32>,
    return
  }
  func.func @transform_0(%arg0: i32) -> (i32, i32) {
    %c0_i32 = arith.constant 0 : i32
    %c0_i32_0 = arith.constant 0 : i32
    return %arg0, %c0_i32 : i32, i32
  }
  func.func @transform_1(%arg0: i32) -> (i32, i32) {
    %c0_i32 = arith.constant 0 : i32
    %c0_i32_0 = arith.constant 0 : i32
    %c0_i32_1 = arith.constant 0 : i32
    return %c0_i32, %c0_i32_0 : i32, i32
  }
  func.func @transform_2(%arg0: i32) -> (i32, i32) {
    %c0_i32 = arith.constant 0 : i32
    %c0_i32_0 = arith.constant 0 : i32
    %c0_i32_1 = arith.constant 0 : i32
    return %c0_i32, %c0_i32_0 : i32, i32
  }
  func.func @transform_3(%arg0: i32) -> (i32, i32) {
    %c0_i32 = arith.constant 0 : i32
    %c0_i32_0 = arith.constant 0 : i32
    %c0_i32_1 = arith.constant 0 : i32
    return %c0_i32, %c0_i32_0 : i32, i32
  }
  func.func @transform_4(%arg0: i32) -> (i32, i32) {
    %c0_i32 = arith.constant 0 : i32
    %c0_i32_0 = arith.constant 0 : i32
    %c0_i32_1 = arith.constant 0 : i32
    return %c0_i32, %c0_i32_0 : i32, i32
  }
  func.func @transform_5(%arg0: i32) -> (i32, i32) {
    %c0_i32 = arith.constant 0 : i32
    %c0_i32_0 = arith.constant 0 : i32
    %c0_i32_1 = arith.constant 0 : i32
    return %c0_i32, %c0_i32_0 : i32, i32
  }
  func.func @transform_6(%arg0: i32) -> (i32, i32) {
    %c0_i32 = arith.constant 0 : i32
    %c0_i32_0 = arith.constant 0 : i32
    %c0_i32_1 = arith.constant 0 : i32
    return %c0_i32, %c0_i32_0 : i32, i32
  }
  func.func @transform_7(%arg0: i32) -> (i32, i32) {
    %c0_i32 = arith.constant 0 : i32
    %c0_i32_0 = arith.constant 0 : i32
    %c0_i32_1 = arith.constant 0 : i32
    return %c0_i32, %c0_i32_0 : i32, i32
  }
  func.func @transform_8(%arg0: i32) -> (i32, i32) {
    %c0_i32 = arith.constant 0 : i32
    %c0_i32_0 = arith.constant 0 : i32
    %c0_i32_1 = arith.constant 0 : i32
    return %c0_i32, %c0_i32_0 : i32, i32
  }
  func.func @transform_9(%arg0: i32) -> (i32, i32, i32) {
    %c0_i32 = arith.constant 0 : i32
    %c0_i32_0 = arith.constant 0 : i32
    %c0_i32_1 = arith.constant 0 : i32
    return %arg0, %c0_i32, %c0_i32_0 : i32, i32, i32
  }
}

module attributes {stable_mosaic.version = 11 : i64} {
  func.func @mixvpr_kernel(%arg0: i32, %arg1: memref<8x16xf32, #tpu.memory_space<vmem>>, %arg2: memref<1x16xf32, #tpu.memory_space<vmem>>, %arg3: memref<1x16xf32, #tpu.memory_space<vmem>>, %arg4: memref<16x16xbf16, #tpu.memory_space<vmem>>, %arg5: memref<1x16xf32, #tpu.memory_space<vmem>>, %arg6: memref<16x4xbf16, #tpu.memory_space<vmem>>, %arg7: memref<16x4xbf16, #tpu.memory_space<vmem>>, %arg8: memref<8x16xbf16, #tpu.memory_space<vmem>>, %arg9: memref<4x16xf32, #tpu.memory_space<vmem>>, %arg10: memref<1x4x16xf32, #tpu.memory_space<vmem>>) attributes {dimension_semantics = [#tpu.dimension_semantics<parallel>], iteration_bounds = array<i64: 2>, scalar_prefetch = 0 : i64, scratch_operands = 0 : i64, tpu.core_type = #tpu.core_type<tc>, window_params = [{transform_indices = @transform_0, window_bounds = array<i64: 8, 16>}, {pipeline_mode = #tpu.pipeline_mode<synchronous>, transform_indices = @transform_1, window_bounds = array<i64: 1, 16>}, {pipeline_mode = #tpu.pipeline_mode<synchronous>, transform_indices = @transform_2, window_bounds = array<i64: 1, 16>}, {pipeline_mode = #tpu.pipeline_mode<synchronous>, transform_indices = @transform_3, window_bounds = array<i64: 16, 16>}, {pipeline_mode = #tpu.pipeline_mode<synchronous>, transform_indices = @transform_4, window_bounds = array<i64: 1, 16>}, {pipeline_mode = #tpu.pipeline_mode<synchronous>, transform_indices = @transform_5, window_bounds = array<i64: 16, 4>}, {pipeline_mode = #tpu.pipeline_mode<synchronous>, transform_indices = @transform_6, window_bounds = array<i64: 16, 4>}, {pipeline_mode = #tpu.pipeline_mode<synchronous>, transform_indices = @transform_7, window_bounds = array<i64: 8, 16>}, {pipeline_mode = #tpu.pipeline_mode<synchronous>, transform_indices = @transform_8, window_bounds = array<i64: 4, 16>}, {transform_indices = @transform_9, window_bounds = array<i64: 1, 4, 16>}]} {
    %c0 = arith.constant 0 : index
    %c0_0 = arith.constant 0 : index
    %0 = vector.load %arg1[%c0, %c0_0] : memref<8x16xf32, #tpu.memory_space<vmem>>, vector<8x16xf32>
    %cst = arith.constant dense<0.000000e+00> : vector<8xf32>
    %1 = vector.multi_reduction <add>, %0, %cst [1] : vector<8x16xf32> to vector<8xf32>
    %2 = vector.shape_cast %1 : vector<8xf32> to vector<8x1xf32>
    %3 = arith.mulf %0, %0 : vector<8x16xf32>
    %cst_1 = arith.constant dense<0.000000e+00> : vector<8xf32>
    %4 = vector.multi_reduction <add>, %3, %cst_1 [1] : vector<8x16xf32> to vector<8xf32>
    %5 = vector.shape_cast %4 : vector<8xf32> to vector<8x1xf32>
    %cst_2 = arith.constant 6.250000e-02 : f32
    %6 = vector.broadcast %cst_2 : f32 to vector<8x1xf32>
    %7 = arith.mulf %2, %6 : vector<8x1xf32>
    %cst_3 = arith.constant 6.250000e-02 : f32
    %8 = vector.broadcast %cst_3 : f32 to vector<8x1xf32>
    %9 = arith.mulf %5, %8 : vector<8x1xf32>
    %10 = arith.mulf %7, %7 : vector<8x1xf32>
    %11 = arith.subf %9, %10 : vector<8x1xf32>
    %cst_4 = arith.constant 0.000000e+00 : f32
    %12 = vector.broadcast %cst_4 : f32 to vector<8x1xf32>
    %13 = arith.maximumf %11, %12 : vector<8x1xf32>
    %14 = vector.broadcast %7 : vector<8x1xf32> to vector<8x16xf32>
    %15 = arith.subf %0, %14 : vector<8x16xf32>
    %cst_5 = arith.constant 9.99999974E-6 : f32
    %16 = vector.broadcast %cst_5 : f32 to vector<8x1xf32>
    %17 = arith.addf %13, %16 : vector<8x1xf32>
    %18 = math.rsqrt %17 : vector<8x1xf32>
    %19 = vector.broadcast %18 : vector<8x1xf32> to vector<8x16xf32>
    %20 = arith.mulf %15, %19 : vector<8x16xf32>
    %c0_6 = arith.constant 0 : index
    %c0_7 = arith.constant 0 : index
    %21 = vector.load %arg2[%c0_6, %c0_7] : memref<1x16xf32, #tpu.memory_space<vmem>>, vector<1x16xf32>
    %22 = vector.broadcast %21 : vector<1x16xf32> to vector<8x16xf32>
    %23 = arith.mulf %20, %22 : vector<8x16xf32>
    %c0_8 = arith.constant 0 : index
    %c0_9 = arith.constant 0 : index
    %24 = vector.load %arg3[%c0_8, %c0_9] : memref<1x16xf32, #tpu.memory_space<vmem>>, vector<1x16xf32>
    %25 = vector.broadcast %24 : vector<1x16xf32> to vector<8x16xf32>
    %26 = arith.addf %23, %25 : vector<8x16xf32>
    %27 = arith.truncf %26 : vector<8x16xf32> to vector<8x16xbf16>
    %c0_10 = arith.constant 0 : index
    %c0_11 = arith.constant 0 : index
    %28 = vector.load %arg4[%c0_10, %c0_11] : memref<16x16xbf16, #tpu.memory_space<vmem>>, vector<16x16xbf16>
    %cst_12 = arith.constant dense<0.000000e+00> : vector<8x16xf32>
    %29 = tpu.matmul %27, %28, %cst_12 {dimension_numbers = #tpu.dot_dimension_numbers<[1], [0], [0], [1], [0, 0, 1, 1], [], []>} : vector<8x16xbf16>, vector<16x16xbf16>, vector<8x16xf32> -> vector<8x16xf32>
    %c0_13 = arith.constant 0 : index
    %c0_14 = arith.constant 0 : index
    %30 = vector.load %arg5[%c0_13, %c0_14] : memref<1x16xf32, #tpu.memory_space<vmem>>, vector<1x16xf32>
    %31 = vector.broadcast %30 : vector<1x16xf32> to vector<8x16xf32>
    %32 = arith.addf %29, %31 : vector<8x16xf32>
    %cst_15 = arith.constant 0.000000e+00 : f32
    %33 = vector.broadcast %cst_15 : f32 to vector<8x16xf32>
    %34 = arith.maximumf %32, %33 : vector<8x16xf32>
    %35 = arith.truncf %0 : vector<8x16xf32> to vector<8x16xbf16>
    %c0_16 = arith.constant 0 : index
    %c0_17 = arith.constant 0 : index
    %36 = vector.load %arg6[%c0_16, %c0_17] : memref<16x4xbf16, #tpu.memory_space<vmem>>, vector<16x4xbf16>
    %cst_18 = arith.constant dense<0.000000e+00> : vector<8x4xf32>
    %37 = tpu.matmul %35, %36, %cst_18 {dimension_numbers = #tpu.dot_dimension_numbers<[1], [0], [0], [1], [0, 0, 1, 1], [], []>} : vector<8x16xbf16>, vector<16x4xbf16>, vector<8x4xf32> -> vector<8x4xf32>
    %38 = arith.truncf %34 : vector<8x16xf32> to vector<8x16xbf16>
    %c0_19 = arith.constant 0 : index
    %c0_20 = arith.constant 0 : index
    %39 = vector.load %arg7[%c0_19, %c0_20] : memref<16x4xbf16, #tpu.memory_space<vmem>>, vector<16x4xbf16>
    %cst_21 = arith.constant dense<0.000000e+00> : vector<8x4xf32>
    %40 = tpu.matmul %38, %39, %cst_21 {dimension_numbers = #tpu.dot_dimension_numbers<[1], [0], [0], [1], [0, 0, 1, 1], [], []>} : vector<8x16xbf16>, vector<16x4xbf16>, vector<8x4xf32> -> vector<8x4xf32>
    %41 = arith.addf %37, %40 : vector<8x4xf32>
    %42 = arith.truncf %41 : vector<8x4xf32> to vector<8x4xbf16>
    %c0_22 = arith.constant 0 : index
    %c0_23 = arith.constant 0 : index
    %43 = vector.load %arg8[%c0_22, %c0_23] : memref<8x16xbf16, #tpu.memory_space<vmem>>, vector<8x16xbf16>
    %cst_24 = arith.constant dense<0.000000e+00> : vector<4x16xf32>
    %44 = tpu.matmul %42, %43, %cst_24 {dimension_numbers = #tpu.dot_dimension_numbers<[0], [0], [1], [1], [0, 1, 1, 1], [], []>} : vector<8x4xbf16>, vector<8x16xbf16>, vector<4x16xf32> -> vector<4x16xf32>
    %45 = vector.shape_cast %44 : vector<4x16xf32> to vector<1x4x16xf32>
    %c0_25 = arith.constant 0 : index
    %c0_26 = arith.constant 0 : index
    %46 = vector.load %arg9[%c0_25, %c0_26] : memref<4x16xf32, #tpu.memory_space<vmem>>, vector<4x16xf32>
    %47 = vector.shape_cast %46 : vector<4x16xf32> to vector<1x4x16xf32>
    %48 = arith.addf %45, %47 : vector<1x4x16xf32>
    %49 = arith.mulf %48, %48 : vector<1x4x16xf32>
    %cst_27 = arith.constant dense<0.000000e+00> : vector<1x4xf32>
    %50 = vector.multi_reduction <add>, %49, %cst_27 [2] : vector<1x4x16xf32> to vector<1x4xf32>
    %51 = vector.shape_cast %50 : vector<1x4xf32> to vector<1x4x1xf32>
    %cst_28 = arith.constant dense<0.000000e+00> : vector<1x1xf32>
    %52 = vector.multi_reduction <add>, %51, %cst_28 [1] : vector<1x4x1xf32> to vector<1x1xf32>
    %53 = vector.shape_cast %52 : vector<1x1xf32> to vector<1x1x1xf32>
    %cst_29 = arith.constant 1.000000e-24 : f32
    %54 = vector.broadcast %cst_29 : f32 to vector<1x1x1xf32>
    %55 = arith.maximumf %53, %54 : vector<1x1x1xf32>
    %56 = math.rsqrt %55 : vector<1x1x1xf32>
    %57 = vector.broadcast %56 : vector<1x1x1xf32> to vector<1x4x16xf32>
    %58 = arith.mulf %48, %57 : vector<1x4x16xf32>
    %c0_30 = arith.constant 0 : index
    %c0_31 = arith.constant 0 : index
    %c0_32 = arith.constant 0 : index
    %59 = vector.load %arg10[%c0_30, %c0_31, %c0_32] : memref<1x4x16xf32, #tpu.memory_space<vmem>>, vector<1x4x16xf32>
    tpu.vector_store %arg10[%c0_30, %c0_31, %c0_32], %58 {strides = array<i32>} : memref<1x4x16xf32, #tpu.memory_space<vmem>>, vector<1x4x16xf32>,
    return
  }
  func.func @transform_0(%arg0: i32) -> (i32, i32) {
    %c0_i32 = arith.constant 0 : i32
    %c0_i32_0 = arith.constant 0 : i32
    return %arg0, %c0_i32 : i32, i32
  }
  func.func @transform_1(%arg0: i32) -> (i32, i32) {
    %c0_i32 = arith.constant 0 : i32
    %c0_i32_0 = arith.constant 0 : i32
    %c0_i32_1 = arith.constant 0 : i32
    return %c0_i32, %c0_i32_0 : i32, i32
  }
  func.func @transform_2(%arg0: i32) -> (i32, i32) {
    %c0_i32 = arith.constant 0 : i32
    %c0_i32_0 = arith.constant 0 : i32
    %c0_i32_1 = arith.constant 0 : i32
    return %c0_i32, %c0_i32_0 : i32, i32
  }
  func.func @transform_3(%arg0: i32) -> (i32, i32) {
    %c0_i32 = arith.constant 0 : i32
    %c0_i32_0 = arith.constant 0 : i32
    %c0_i32_1 = arith.constant 0 : i32
    return %c0_i32, %c0_i32_0 : i32, i32
  }
  func.func @transform_4(%arg0: i32) -> (i32, i32) {
    %c0_i32 = arith.constant 0 : i32
    %c0_i32_0 = arith.constant 0 : i32
    %c0_i32_1 = arith.constant 0 : i32
    return %c0_i32, %c0_i32_0 : i32, i32
  }
  func.func @transform_5(%arg0: i32) -> (i32, i32) {
    %c0_i32 = arith.constant 0 : i32
    %c0_i32_0 = arith.constant 0 : i32
    %c0_i32_1 = arith.constant 0 : i32
    return %c0_i32, %c0_i32_0 : i32, i32
  }
  func.func @transform_6(%arg0: i32) -> (i32, i32) {
    %c0_i32 = arith.constant 0 : i32
    %c0_i32_0 = arith.constant 0 : i32
    %c0_i32_1 = arith.constant 0 : i32
    return %c0_i32, %c0_i32_0 : i32, i32
  }
  func.func @transform_7(%arg0: i32) -> (i32, i32) {
    %c0_i32 = arith.constant 0 : i32
    %c0_i32_0 = arith.constant 0 : i32
    %c0_i32_1 = arith.constant 0 : i32
    return %c0_i32, %c0_i32_0 : i32, i32
  }
  func.func @transform_8(%arg0: i32) -> (i32, i32) {
    %c0_i32 = arith.constant 0 : i32
    %c0_i32_0 = arith.constant 0 : i32
    %c0_i32_1 = arith.constant 0 : i32
    return %c0_i32, %c0_i32_0 : i32, i32
  }
  func.func @transform_9(%arg0: i32) -> (i32, i32, i32) {
    %c0_i32 = arith.constant 0 : i32
    %c0_i32_0 = arith.constant 0 : i32
    %c0_i32_1 = arith.constant 0 : i32
    return %arg0, %c0_i32, %c0_i32_0 : i32, i32, i32
  }
}

</mosaic_0001>

<llo_original>
// kernel: tpu_custom_call.1
$region0: #{tpu_custom_call.1}
  #allocation0 [shape = 'u32[]', space=smem, size = 0x4, offset = 0x4, fixed_abs, tag = 'smem constant byte address 0x4 - core index']
  #allocation1 [shape = 'u32[72,128]{1,0:T(1,128)}', space=vmem, size = 0x9000, scoped, tag = 'internal scratch']
  %s0 = inlined_call_operand.vmem [shape: f32[16,16], index: 0, kind: input, shape index: {}]
  %s1 = inlined_call_operand.vmem [shape: f32[1,16], index: 1, kind: input, shape index: {}]
  %s2 = inlined_call_operand.vmem [shape: f32[1,16], index: 2, kind: input, shape index: {}]
  %s3 = inlined_call_operand.hbm [shape: bf16[16,16], index: 3, kind: input, shape index: {}]
  %s4 = inlined_call_operand.hbm [shape: f32[1,16], index: 4, kind: input, shape index: {}]
  %s5 = inlined_call_operand.vmem [shape: bf16[16,4], index: 5, kind: input, shape index: {}]
  %s6 = inlined_call_operand.vmem [shape: bf16[16,4], index: 6, kind: input, shape index: {}]
  %s7 = inlined_call_operand.vmem [shape: bf16[8,16], index: 7, kind: input, shape index: {}]
  %s8 = inlined_call_operand.hbm [shape: f32[4,16], index: 8, kind: input, shape index: {}]
  %s9 = inlined_call_operand.hbm [shape: f32[2,4,16], index: 9, kind: output, shape index: {}]
  %s10 = sld [smem:[#allocation0]]
  $region81: #{tpu_custom_call.1} parent=0
    _
  %s12 = ssub.s32 1, %s10
  %s13 = scalar_select 0, %s12, %s10
  $region1: #{tpu_custom_call.1} parent=0
    #allocation2 [shape = 'u8[4096]{0}', space=vmem, size = 0x1000, scoped, tag = 'input window, operand 3, single buffered']
    #allocation3 [shape = 's32[2]{0}', space=sflag, size = 0x8, scoped, tag = 'scoped memory for tpu_custom_call.1']
    #allocation4 [shape = 's32[2]{0}', space=sflag, size = 0x8, scoped, tag = 'scoped memory for tpu_custom_call.1']
    #allocation5 [shape = 'u8[512]{0}', space=vmem, size = 0x400, scoped, tag = 'input window, operand 4, single buffered']
    #allocation6 [shape = 's32[1]{0}', space=sflag, size = 0x4, scoped, tag = 'scoped memory for tpu_custom_call.1']
    #allocation7 [shape = 'u8[2048]{0}', space=vmem, size = 0x800, scoped, tag = 'input window, operand 8, single buffered']
    #allocation8 [shape = 'u8[4096]{0}', space=vmem, size = 0x1000, scoped, tag = 'output window, operand 0']
    %14 = vsyncpa [#allocation3], 0
    %15 = vsyncpa [#allocation6], 0
    %16 = vsyncpa [#allocation4], 0
    %s17 = scalar_lea.sflag [#allocation4], 1
    %18 = vsyncpa %s17, 0
    loop: start=0, step=1, limit=4
    $region2: #{tpu_custom_call.1} parent=1 // loop_pre_header
      _
    $region3: #{tpu_custom_call.1} parent=1 // loop_header
      %s20 = sphi 0, %s24
      %p21 = scmp.ge.s32.totalorder %s20, 4
      %s30 = sphi 0, %s32
      %s33 = sphi 0, %s30
      %s34 = sphi 0, %s33
      %s50 = sphi 0, %s34
      %s54 = sphi 0, %s54
      %s56 = sphi 0, %s54
      %s57 = sphi 0, %s56
      %s71 = sphi 0, %s57
      %s75 = sphi 0, %s75
      %s77 = sphi 0, %s75
      %s78 = sphi 0, %s77
      %s92 = sphi 0, %s78
      %s96 = sphi 0, %s96
      %s98 = sphi 0, %s96
      %s99 = sphi 0, %s98
      %s113 = sphi 0, %s99
      %s117 = sphi 0, %s117
      %s119 = sphi 0, %s117
      %s120 = sphi 0, %s119
      %s134 = sphi 0, %s120
      %s138 = sphi 0, %s138
      %s140 = sphi 0, %s138
      %s141 = sphi 0, %s140
      %s155 = sphi 0, %s141
      %s159 = sphi 0, %s159
      %s161 = sphi 0, %s159
      %s162 = sphi 0, %s161
      %s176 = sphi 0, %s162
      %s180 = sphi 0, %s180
      %s182 = sphi 0, %s180
      %s183 = sphi 0, %s182
      %s197 = sphi 0, %s183
      %s201 = sphi 0, %s201
      %s203 = sphi 0, %s201
      %s204 = sphi 0, %s203
      %s218 = sphi 0, %s204
      %s224 = sphi 0, %s226
      %s227 = sphi 0, %s224
      %s228 = sphi 0, %s227
      %s244 = sphi 0, %s228
    $region4: #{tpu_custom_call.1} parent=1 // loop_header_branch
      %23 = sbr.rel (%p21) target = $region8
    $region5: #{tpu_custom_call.1} parent=1 // loop_body
      %s25 = ssub.s32 %s20, 1
      %s26 = ssub.s32 %s20, 2
      %s27 = sadd.s32 %s20, 1
      %s28 = ssub.s32 %s20, %s27
      %p29 = scmp.eq.s32.totalorder %s28, 0
      %s31 = sadd.s32 %s30, 1
      %s32 = scalar_select %p29, %s30, %s31
      %p35 = pneg %p29
      %p36 = scmp.eq.s32.totalorder %s20, 1
      %p37 = por %p35, %p36
      %p38 = scmp.ne.s32.totalorder %s30, %s33
      %p39 = scmp.eq.s32.totalorder %s20, 0
      %p40 = por %p38, %p39
      %p41 = scmp.ne.s32.totalorder %s30, %s33
      %p42 = scmp.eq.s32.totalorder %s25, 1
      %p43 = por %p41, %p42
      %p44 = scmp.ne.s32.totalorder %s33, %s34
      %p45 = scmp.eq.s32.totalorder %s25, 0
      %p46 = por %p44, %p45
      %p47 = scmp.ne.s32.totalorder %s33, %s34
      %p48 = scmp.eq.s32.totalorder %s26, 1
      %p49 = por %p47, %p48
      %p51 = scmp.ne.s32.totalorder %s34, %s50
      %p52 = scmp.eq.s32.totalorder %s26, 0
      %p53 = por %p51, %p52
      %s55 = sadd.s32 %s54, 1
      %p58 = scmp.eq.s32.totalorder %s20, 1
      %p59 = scmp.ne.s32.totalorder %s54, %s56
      %p60 = scmp.eq.s32.totalorder %s20, 0
      %p61 = por %p59, %p60
      %p62 = scmp.ne.s32.totalorder %s54, %s56
      %p63 = scmp.eq.s32.totalorder %s25, 1
      %p64 = por %p62, %p63
      %p65 = scmp.ne.s32.totalorder %s56, %s57
      %p66 = scmp.eq.s32.totalorder %s25, 0
      %p67 = por %p65, %p66
      %p68 = scmp.ne.s32.totalorder %s56, %s57
      %p69 = scmp.eq.s32.totalorder %s26, 1
      %p70 = por %p68, %p69
      %p72 = scmp.ne.s32.totalorder %s57, %s71
      %p73 = scmp.eq.s32.totalorder %s26, 0
      %p74 = por %p72, %p73
      %s76 = sadd.s32 %s75, 1
      %p79 = scmp.eq.s32.totalorder %s20, 1
      %p80 = scmp.ne.s32.totalorder %s75, %s77
      %p81 = scmp.eq.s32.totalorder %s20, 0
      %p82 = por %p80, %p81
      %p83 = scmp.ne.s32.totalorder %s75, %s77
      %p84 = scmp.eq.s32.totalorder %s25, 1
      %p85 = por %p83, %p84
      %p86 = scmp.ne.s32.totalorder %s77, %s78
      %p87 = scmp.eq.s32.totalorder %s25, 0
      %p88 = por %p86, %p87
      %p89 = scmp.ne.s32.totalorder %s77, %s78
      %p90 = scmp.eq.s32.totalorder %s26, 1
      %p91 = por %p89, %p90
      %p93 = scmp.ne.s32.totalorder %s78, %s92
      %p94 = scmp.eq.s32.totalorder %s26, 0
      %p95 = por %p93, %p94
      %s97 = sadd.s32 %s96, 1
      %p100 = scmp.eq.s32.totalorder %s20, 1
      %p101 = scmp.ne.s32.totalorder %s96, %s98
      %p102 = scmp.eq.s32.totalorder %s20, 0
      %p103 = por %p101, %p102
      %p104 = scmp.ne.s32.totalorder %s96, %s98
      %p105 = scmp.eq.s32.totalorder %s25, 1
      %p106 = por %p104, %p105
      %p107 = scmp.ne.s32.totalorder %s98, %s99
      %p108 = scmp.eq.s32.totalorder %s25, 0
      %p109 = por %p107, %p108
      %p110 = scmp.ne.s32.totalorder %s98, %s99
      %p111 = scmp.eq.s32.totalorder %s26, 1
      %p112 = por %p110, %p111
      %p114 = scmp.ne.s32.totalorder %s99, %s113
      %p115 = scmp.eq.s32.totalorder %s26, 0
      %p116 = por %p114, %p115
      %s118 = sadd.s32 %s117, 1
      %p121 = scmp.eq.s32.totalorder %s20, 1
      %p122 = scmp.ne.s32.totalorder %s117, %s119
      %p123 = scmp.eq.s32.totalorder %s20, 0
      %p124 = por %p122, %p123
      %p125 = scmp.ne.s32.totalorder %s117, %s119
      %p126 = scmp.eq.s32.totalorder %s25, 1
      %p127 = por %p125, %p126
      %p128 = scmp.ne.s32.totalorder %s119, %s120
      %p129 = scmp.eq.s32.totalorder %s25, 0
      %p130 = por %p128, %p129
      %p131 = scmp.ne.s32.totalorder %s119, %s120
      %p132 = scmp.eq.s32.totalorder %s26, 1
      %p133 = por %p131, %p132
      %p135 = scmp.ne.s32.totalorder %s120, %s134
      %p136 = scmp.eq.s32.totalorder %s26, 0
      %p137 = por %p135, %p136
      %s139 = sadd.s32 %s138, 1
      %p142 = scmp.eq.s32.totalorder %s20, 1
      %p143 = scmp.ne.s32.totalorder %s138, %s140
      %p144 = scmp.eq.s32.totalorder %s20, 0
      %p145 = por %p143, %p144
      %p146 = scmp.ne.s32.totalorder %s138, %s140
      %p147 = scmp.eq.s32.totalorder %s25, 1
      %p148 = por %p146, %p147
      %p149 = scmp.ne.s32.totalorder %s140, %s141
      %p150 = scmp.eq.s32.totalorder %s25, 0
      %p151 = por %p149, %p150
      %p152 = scmp.ne.s32.totalorder %s140, %s141
      %p153 = scmp.eq.s32.totalorder %s26, 1
      %p154 = por %p152, %p153
      %p156 = scmp.ne.s32.totalorder %s141, %s155
      %p157 = scmp.eq.s32.totalorder %s26, 0
      %p158 = por %p156, %p157
      %s160 = sadd.s32 %s159, 1
      %p163 = scmp.eq.s32.totalorder %s20, 1
      %p164 = scmp.ne.s32.totalorder %s159, %s161
      %p165 = scmp.eq.s32.totalorder %s20, 0
      %p166 = por %p164, %p165
      %p167 = scmp.ne.s32.totalorder %s159, %s161
      %p168 = scmp.eq.s32.totalorder %s25, 1
      %p169 = por %p167, %p168
      %p170 = scmp.ne.s32.totalorder %s161, %s162
      %p171 = scmp.eq.s32.totalorder %s25, 0
      %p172 = por %p170, %p171
      %p173 = scmp.ne.s32.totalorder %s161, %s162
      %p174 = scmp.eq.s32.totalorder %s26, 1
      %p175 = por %p173, %p174
      %p177 = scmp.ne.s32.totalorder %s162, %s176
      %p178 = scmp.eq.s32.totalorder %s26, 0
      %p179 = por %p177, %p178
      %s181 = sadd.s32 %s180, 1
      %p184 = scmp.eq.s32.totalorder %s20, 1
      %p185 = scmp.ne.s32.totalorder %s180, %s182
      %p186 = scmp.eq.s32.totalorder %s20, 0
      %p187 = por %p185, %p186
      %p188 = scmp.ne.s32.totalorder %s180, %s182
      %p189 = scmp.eq.s32.totalorder %s25, 1
      %p190 = por %p188, %p189
      %p191 = scmp.ne.s32.totalorder %s182, %s183
      %p192 = scmp.eq.s32.totalorder %s25, 0
      %p193 = por %p191, %p192
      %p194 = scmp.ne.s32.totalorder %s182, %s183
      %p195 = scmp.eq.s32.totalorder %s26, 1
      %p196 = por %p194, %p195
      %p198 = scmp.ne.s32.totalorder %s183, %s197
      %p199 = scmp.eq.s32.totalorder %s26, 0
      %p200 = por %p198, %p199
      %s202 = sadd.s32 %s201, 1
      %p205 = scmp.eq.s32.totalorder %s20, 1
      %p206 = scmp.ne.s32.totalorder %s201, %s203
      %p207 = scmp.eq.s32.totalorder %s20, 0
      %p208 = por %p206, %p207
      %p209 = scmp.ne.s32.totalorder %s201, %s203
      %p210 = scmp.eq.s32.totalorder %s25, 1
      %p211 = por %p209, %p210
      %p212 = scmp.ne.s32.totalorder %s203, %s204
      %p213 = scmp.eq.s32.totalorder %s25, 0
      %p214 = por %p212, %p213
      %p215 = scmp.ne.s32.totalorder %s203, %s204
      %p216 = scmp.eq.s32.totalorder %s26, 1
      %p217 = por %p215, %p216
      %p219 = scmp.ne.s32.totalorder %s204, %s218
      %p220 = scmp.eq.s32.totalorder %s26, 0
      %p221 = por %p219, %p220
      %s222 = ssub.s32 %s20, %s27
      %p223 = scmp.eq.s32.totalorder %s222, 0
      %s225 = sadd.s32 %s224, 1
      %s226 = scalar_select %p223, %s224, %s225
      %p229 = pneg %p223
      %p230 = scmp.eq.s32.totalorder %s20, 1
      %p231 = por %p229, %p230
      %p232 = scmp.ne.s32.totalorder %s224, %s227
      %p233 = scmp.eq.s32.totalorder %s20, 0
      %p234 = por %p232, %p233
      %p235 = scmp.ne.s32.totalorder %s224, %s227
      %p236 = scmp.eq.s32.totalorder %s25, 1
      %p237 = por %p235, %p236
      %p238 = scmp.ne.s32.totalorder %s227, %s228
      %p239 = scmp.eq.s32.totalorder %s25, 0
      %p240 = por %p238, %p239
      %p241 = scmp.ne.s32.totalorder %s227, %s228
      %p242 = scmp.eq.s32.totalorder %s26, 1
      %p243 = por %p241, %p242
      %p245 = scmp.ne.s32.totalorder %s228, %s244
      %p246 = scmp.eq.s32.totalorder %s26, 0
      %p247 = por %p245, %p246
      %p248 = scmp.le.s32.totalorder 1, %s20
      %p249 = scmp.lt.s32.totalorder %s20, 3
      %p250 = pnand %p248, %p249
      %p251 = pneg %p250
      // Predicated region
      $region9: #{tpu_custom_call.1} parent=5 // pred_check
        _
      $region10: #{tpu_custom_call.1} parent=5 // pred_check_branch
        %253 = sbr.rel (%p250) target = $region12
      $region11: #{tpu_custom_call.1} parent=5 // pred_region
        %s254 = ssub.s32 %s20, 1
        // Predicated region
        $region13: #{tpu_custom_call.1} parent=11 // pred_check
          %p255 = pneg %p67
        $region14: #{tpu_custom_call.1} parent=11 // pred_check_branch
          %257 = sbr.rel (%p255) target = $region16
        $region15: #{tpu_custom_call.1} parent=11 // pred_region
          _
        $region16: #{tpu_custom_call.1} parent=11 // pred_fallthru
          _
        // Predicated region
        $region17: #{tpu_custom_call.1} parent=11 // pred_check
          %p258 = pneg %p88
        $region18: #{tpu_custom_call.1} parent=11 // pred_check_branch
          %260 = sbr.rel (%p258) target = $region20
        $region19: #{tpu_custom_call.1} parent=11 // pred_region
          _
        $region20: #{tpu_custom_call.1} parent=11 // pred_fallthru
          _
        // Predicated region
        $region21: #{tpu_custom_call.1} parent=11 // pred_check
          %p261 = pneg %p109
        $region22: #{tpu_custom_call.1} parent=11 // pred_check_branch
          %263 = sbr.rel (%p261) target = $region24
        $region23: #{tpu_custom_call.1} parent=11 // pred_region
          %265 = vsyncadd [#allocation3], 0
          %s266 = sshll.u32 %s3, 4
          %s267 = int_to_ptr.hbm [resolvable:$true] %s266
          %s268 = sshll.u32 [#allocation2], 4
          %s269 = int_to_ptr.vmem [resolvable:$true] %s268
          %274 = dma.hbm_to_vmem [thread:$0]  %s267, 128, %s269, [#allocation3], 64, 64, 4
        $region24: #{tpu_custom_call.1} parent=11 // pred_fallthru
          _
        // Predicated region
        $region25: #{tpu_custom_call.1} parent=11 // pred_check
          %p275 = pneg %p130
        $region26: #{tpu_custom_call.1} parent=11 // pred_check_branch
          %277 = sbr.rel (%p275) target = $region28
        $region27: #{tpu_custom_call.1} parent=11 // pred_region
          %279 = vsyncadd [#allocation6], 0
          %s281 = sshll.u32 %s4, 4
          %s282 = int_to_ptr.hbm [resolvable:$true] %s281
          %s283 = sshll.u32 [#allocation5], 4
          %s284 = int_to_ptr.vmem [resolvable:$true] %s283
          %286 = dma.hbm_to_vmem [thread:$0]  %s282, 16, %s284, [#allocation6]
        $region28: #{tpu_custom_call.1} parent=11 // pred_fallthru
          _
        // Predicated region
        $region29: #{tpu_custom_call.1} parent=11 // pred_check
          %p287 = pneg %p151
        $region30: #{tpu_custom_call.1} parent=11 // pred_check_branch
          %289 = sbr.rel (%p287) target = $region32
        $region31: #{tpu_custom_call.1} parent=11 // pred_region
          _
        $region32: #{tpu_custom_call.1} parent=11 // pred_fallthru
          _
        // Predicated region
        $region33: #{tpu_custom_call.1} parent=11 // pred_check
          %p290 = pneg %p172
        $region34: #{tpu_custom_call.1} parent=11 // pred_check_branch
          %292 = sbr.rel (%p290) target = $region36
        $region35: #{tpu_custom_call.1} parent=11 // pred_region
          _
        $region36: #{tpu_custom_call.1} parent=11 // pred_fallthru
          _
        // Predicated region
        $region37: #{tpu_custom_call.1} parent=11 // pred_check
          %p293 = pneg %p193
        $region38: #{tpu_custom_call.1} parent=11 // pred_check_branch
          %295 = sbr.rel (%p293) target = $region40
        $region39: #{tpu_custom_call.1} parent=11 // pred_region
          _
        $region40: #{tpu_custom_call.1} parent=11 // pred_fallthru
          _
        // Predicated region
        $region41: #{tpu_custom_call.1} parent=11 // pred_check
          %p296 = pneg %p214
        $region42: #{tpu_custom_call.1} parent=11 // pred_check_branch
          %298 = sbr.rel (%p296) target = $region44
        $region43: #{tpu_custom_call.1} parent=11 // pred_region
          %300 = vsyncadd [#allocation6], 0
          %s302 = sshll.u32 %s8, 4
          %s303 = int_to_ptr.hbm [resolvable:$true] %s302
          %s304 = sshll.u32 [#allocation7], 4
          %s305 = int_to_ptr.vmem [resolvable:$true] %s304
          %307 = dma.hbm_to_vmem [thread:$0]  %s303, 64, %s305, [#allocation6]
        $region44: #{tpu_custom_call.1} parent=11 // pred_fallthru
          _
      $region12: #{tpu_custom_call.1} parent=5 // pred_fallthru
        _
      %p308 = scmp.lt.s32.totalorder %s20, 2
      // Predicated region
      $region45: #{tpu_custom_call.1} parent=5 // pred_check
        %p309 = pneg %p308
      $region46: #{tpu_custom_call.1} parent=5 // pred_check_branch
        %311 = sbr.rel (%p309) target = $region48
      $region47: #{tpu_custom_call.1} parent=5 // pred_region
        // Predicated region
        $region49: #{tpu_custom_call.1} parent=47 // pred_check
          %p312 = pneg %p40
        $region50: #{tpu_custom_call.1} parent=47 // pred_check_branch
          %314 = sbr.rel (%p312) target = $region52
        $region51: #{tpu_custom_call.1} parent=47 // pred_region
          %p315 = scmp.lt.s32.totalorder %s20, 1
          %s316 = scalar_select %p315, %s20, 1
          %s317 = smul.addr %s316, 8
          %s318 = scalar_lea.vmem %s0, %s317
        $region52: #{tpu_custom_call.1} parent=47 // pred_fallthru
          _
      $region48: #{tpu_custom_call.1} parent=5 // pred_fallthru
        _
      %p319 = scmp.le.s32.totalorder 1, %s20
      %p320 = scmp.lt.s32.totalorder %s20, 3
      %p321 = pnand %p319, %p320
      %p322 = pneg %p321
      // Predicated region
      $region53: #{tpu_custom_call.1} parent=5 // pred_check
        _
      $region54: #{tpu_custom_call.1} parent=5 // pred_check_branch
        %324 = sbr.rel (%p321) target = $region56
      $region55: #{tpu_custom_call.1} parent=5 // pred_region
        %s325 = ssub.s32 %s20, 1
        // Predicated region
        $region57: #{tpu_custom_call.1} parent=55 // pred_check
          %p326 = pneg %p109
        $region58: #{tpu_custom_call.1} parent=55 // pred_check_branch
          %328 = sbr.rel (%p326) target = $region60
        $region59: #{tpu_custom_call.1} parent=55 // pred_region
          %330 = dma.done [#allocation3], 128
        $region60: #{tpu_custom_call.1} parent=55 // pred_fallthru
          _
        // Predicated region
        $region61: #{tpu_custom_call.1} parent=55 // pred_check
          %p331 = pneg %p130
        $region62: #{tpu_custom_call.1} parent=55 // pred_check_branch
          %333 = sbr.rel (%p331) target = $region64
        $region63: #{tpu_custom_call.1} parent=55 // pred_region
          %335 = dma.done [#allocation6], 16
        $region64: #{tpu_custom_call.1} parent=55 // pred_fallthru
          _
        // Predicated region
        $region65: #{tpu_custom_call.1} parent=55 // pred_check
          %p336 = pneg %p214
        $region66: #{tpu_custom_call.1} parent=55 // pred_check_branch
          %338 = sbr.rel (%p336) target = $region68
        $region67: #{tpu_custom_call.1} parent=55 // pred_region
          %340 = dma.done [#allocation6], 64
        $region68: #{tpu_custom_call.1} parent=55 // pred_fallthru
          _
        %p341 = scmp.lt.s32.totalorder %s25, 1
        %s342 = scalar_select %p341, %s25, 1
        %s343 = smul.addr %s342, 8
        %s344 = scalar_lea.vmem %s0, %s343
        %p345 = pneg %p46
        %p346 = pneg %p43
        %p347 = pneg %p67
        %p348 = pneg %p64
        %p349 = pneg %p88
        %p350 = pneg %p85
        %p351 = pneg %p109
        %p352 = pneg %p106
        %p353 = pneg %p130
        %p354 = pneg %p127
        %p355 = pneg %p151
        %p356 = pneg %p148
        %p357 = pneg %p172
        %p358 = pneg %p169
        %p359 = pneg %p193
        %p360 = pneg %p190
        %p361 = pneg %p214
        %p362 = pneg %p211
        %p363 = pneg %p240
        %p364 = pneg %p237
        %s365 = sand.u32 %s227, 1
        %s366 = scalar_lea.sflag [#allocation4], %s365
        %s367 = sand.u32 %s227, 1
        %s368 = smul.addr %s367, 4
        %s369 = scalar_lea.vmem [#allocation8], %s368
        %p370 = scmp.lt.s32.totalorder %s25, 1
        %s371 = scalar_select %p370, %s25, 1
        %s372 = smul.addr %s371, 8
        %s373 = scalar_lea.vmem %s0, %s372
        %v375 = vld [vmem:[%s373] sm:$0xff]
        %vm376 = vcmask 130048
        %v377 = vsel %vm376, %v375, 0.0
        %378 = vadd.xlane.f32.xlu0 %v377
        %v379 = vpop.xlane.xlu0 %378
        %v380 = vmul.f32 %v375, %v375
        %v381 = vsel %vm376, %v380, 0.0
        %382 = vadd.xlane.f32.xlu0 %v381
        %v383 = vpop.xlane.xlu0 %382
        %v384 = vmul.f32 %v379, 0.0625
        %v385 = vmul.f32 %v383, 0.0625
        %v386 = vmul.f32 %v384, %v384
        %v387 = vsub.f32 %v385, %v386
        %v388 = vmax.f32 %v387, 0.0
        %v389 = vsub.f32 %v375, %v384
        %v390 = vadd.f32 %v388, 1e-05
        %v391 = vrsqrt.pop %v390
        %v392 = vmul.f32 %v391, %v390
        %v393 = vmul.f32 %v392, %v391
        %v394 = vmul.f32 0.5, %v393
        %v395 = vsub.f32 1.5, %v394
        %v396 = vmul.f32 %v391, %v395
        %vm397 = vweird.f32 %v390
        %vm398 = vweird.f32 %v391
        %vm399 = vmor %vm397, %vm398
        %v400 = vsel %vm399, %v391, %v396
        %v401 = vmul.f32 %v389, %v400
        %v402 = vld [vmem:[%s1] sm:$0x1]
        %v404 = vperm.slane %v402, 0
        %v406 = vmul.f32 %v401, %v404
        %v407 = vld [vmem:[%s2] sm:$0x1]
        %v409 = vperm.slane %v407, 0
        %v411 = vadd.f32 %v406, %v409
        %v412 = vpack.c.bf16 %v411, %v411
        %v413 = vld [vmem:[#allocation2] sm:$0xf]
        %v414 = vld [vmem:[#allocation2 + $0x4] sm:$0xf]
        %v415 = vld [vmem:[#allocation5] sm:$0x1]
        %v417 = vperm.slane %v415, 0
        %v421 = vunpack.c.l.b16 %v413
        %v422 = vunpack.c.l.b16 %v414
        %v423 = vpack.c.b16 %v422, %v421
        %v426 = vsel %vm376, %v412, 0
        %428 = vmatpush.bf16.msra.mxu0 0
        %429 = vmatpush.bf16.msra.mxu0 0
        %430 = vmatpush.bf16.msra.mxu0 0
        %431 = vmatpush.bf16.msra.mxu0 0
        %432 = vmatpush.bf16.msra.mxu0 0
        %433 = vmatpush.bf16.msra.mxu0 0
        %434 = vmatpush.bf16.msra.mxu0 0
        %435 = vmatpush.bf16.msra.mxu0 %v423
        %436 = vmatmul.bf16.gmra.mxu0 %v426
        %v437 = vpop.f32.mrf.mxu0
        %v438 = vadd.f32 %v417, %v437
        %v439 = vpop.f32.mrf.mxu0
        %440 = vdwg.mxu0
        %v441 = vmax.f32 %v438, 0.0
        %v442 = vpack.c.bf16 %v375, %v375
        %v443 = vld [vmem:[%s5] sm:$0xf]
        %v444 = vld [vmem:[%s5 + $0x4] sm:$0xf]
        %v445 = vpack.c.bf16 %v441, %v441
        %v446 = vld [vmem:[%s6] sm:$0xf]
        %v447 = vld [vmem:[%s6 + $0x4] sm:$0xf]
        %v450 = vunpack.c.l.b16 %v446
        %v451 = vunpack.c.l.b16 %v447
        %v452 = vpack.c.b16 %v451, %v450
        %v455 = vsel %vm376, %v445, 0
        %457 = vmatpush.bf16.msra.mxu0 0
        %458 = vmatpush.bf16.msra.mxu0 0
        %459 = vmatpush.bf16.msra.mxu0 0
        %460 = vmatpush.bf16.msra.mxu0 0
        %461 = vmatpush.bf16.msra.mxu0 0
        %462 = vmatpush.bf16.msra.mxu0 0
        %463 = vmatpush.bf16.msra.mxu0 0
        %464 = vmatpush.bf16.msra.mxu0 %v452
        %465 = vmatmul.bf16.gmra.mxu0 %v455
        %v466 = vpop.f32.mrf.mxu0
        %v467 = vadd.f32 0.0, %v466
        %v468 = vpop.f32.mrf.mxu0
        %469 = vdwg.mxu0
        %v472 = vunpack.c.l.b16 %v443
        %v473 = vunpack.c.l.b16 %v444
        %v474 = vpack.c.b16 %v473, %v472
        %v477 = vsel %vm376, %v442, 0
        %479 = vmatpush.bf16.msra.mxu0 0
        %480 = vmatpush.bf16.msra.mxu0 0
        %481 = vmatpush.bf16.msra.mxu0 0
        %482 = vmatpush.bf16.msra.mxu0 0
        %483 = vmatpush.bf16.msra.mxu0 0
        %484 = vmatpush.bf16.msra.mxu0 0
        %485 = vmatpush.bf16.msra.mxu0 0
        %486 = vmatpush.bf16.msra.mxu0 %v474
        %487 = vmatmul.bf16.gmra.mxu0 %v477
        %v488 = vpop.f32.mrf.mxu0
        %v489 = vadd.f32 %v467, %v488
        %v490 = vpop.f32.mrf.mxu0
        %491 = vdwg.mxu0
        %v492 = vpack.c.bf16 %v489, %v489
        %v493 = vld [vmem:[%s7] sm:$0xf]
        %494 = vxpose.xlu0.c.b16.start [1/8] %v492, 128
        %495 = vxpose.xlu0.c.b16.cont [2/8] 0, 128
        %496 = vxpose.xlu0.c.b16.cont [3/8] 0, 128
        %497 = vxpose.xlu0.c.b16.cont [4/8] 0, 128
        %498 = vxpose.xlu0.c.b16.cont [5/8] 0, 128
        %499 = vxpose.xlu0.c.b16.cont [6/8] 0, 128
        %500 = vxpose.xlu0.c.b16.cont [7/8] 0, 128
        %501 = vxpose.xlu0.c.b16.end [8/8] 0, 128
        %v502 = vpop.trf.xlu0
        %v503 = vpop.trf.xlu0
        %v504 = vpop.trf.xlu0
        %v505 = vpop.trf.xlu0
        %v506 = vpop.trf.xlu0
        %v507 = vpop.trf.xlu0
        %v508 = vpop.trf.xlu0
        %v509 = vpop.trf.xlu0
        %vm510 = vcmask 64512
        %v512 = vsel %vm510, %v502, 0
        %vm514 = vcmask 1043456
        %v516 = vsel %vm514, %v493, 0
        %518 = vmatpush.bf16.msra.mxu0 0
        %519 = vmatpush.bf16.msra.mxu0 0
        %520 = vmatpush.bf16.msra.mxu0 0
        %521 = vmatpush.bf16.msra.mxu0 0
        %522 = vmatpush.bf16.msra.mxu0 0
        %523 = vmatpush.bf16.msra.mxu0 0
        %524 = vmatpush.bf16.msra.mxu0 0
        %525 = vmatpush.bf16.msra.mxu0 %v516
        %526 = vmatmul.bf16.gmra.mxu0 %v512
        %v527 = vpop.f32.mrf.mxu0
        %v528 = vadd.f32 0.0, %v527
        %v529 = vpop.f32.mrf.mxu0
        %530 = vdwg.mxu0
        %v531 = vld [vmem:[#allocation7] sm:$0xf]
        %v532 = vadd.f32 %v528, %v531
        %v533 = vmul.f32 %v532, %v532
        %vm534 = vcmask 125952
        %v535 = vsel %vm534, %v533, 0.0
        %536 = vadd.xlane.f32.xlu0 %v535
        %v537 = vpop.xlane.xlu0 %536
        %v538 = vsel %vm514, %v537, 0.0
        %v539 = vrot.slane %v538, 4
        %v540 = vadd.f32 %v538, %v539
        %v541 = vrot.slane %v540, 2
        %v542 = vadd.f32 %v540, %v541
        %v543 = vrot.slane %v542, 1
        %v544 = vadd.f32 %v542, %v543
        %v545 = vmax.f32 %v544, 1e-24
        %v546 = vrsqrt.pop %v545
        %v547 = vmul.f32 %v546, %v545
        %v548 = vmul.f32 %v547, %v546
        %v549 = vmul.f32 0.5, %v548
        %v550 = vsub.f32 1.5, %v549
        %v551 = vmul.f32 %v546, %v550
        %vm552 = vweird.f32 %v545
        %vm553 = vweird.f32 %v546
        %vm554 = vmor %vm552, %vm553
        %v555 = vsel %vm554, %v546, %v551
        %v556 = vmul.f32 %v532, %v555
        %557 = vst.msk [vmem:[%s369] sm:$0xf] %vm534, %v556
        %s558 = sand.u32 %s227, 1
        %s559 = scalar_lea.sflag [#allocation4], %s558
        %s560 = sand.u32 %s227, 1
        %s561 = smul.addr %s560, 4
        %s562 = scalar_lea.vmem [#allocation8], %s561
        // Predicated region
        $region69: #{tpu_custom_call.1} parent=55 // pred_check
          %p563 = pneg %p237
        $region70: #{tpu_custom_call.1} parent=55 // pred_check_branch
          %565 = sbr.rel (%p563) target = $region72
        $region71: #{tpu_custom_call.1} parent=55 // pred_region
          %567 = vsyncadd %s559, 0
          %s568 = smul.addr %s25, 4
          %s569 = scalar_lea.hbm %s9, %s568
          %s571 = sshll.u32 %s562, 4
          %s572 = int_to_ptr.vmem [resolvable:$true] %s571
          %s573 = sshll.u32 %s569, 4
          %s574 = int_to_ptr.hbm [resolvable:$true] %s573
          %576 = dma.vmem_to_hbm [thread:$0]  %s572, 64, %s574, %s559
        $region72: #{tpu_custom_call.1} parent=55 // pred_fallthru
          _
      $region56: #{tpu_custom_call.1} parent=5 // pred_fallthru
        _
      %p577 = scmp.le.s32.totalorder 2, %s20
      // Predicated region
      $region73: #{tpu_custom_call.1} parent=5 // pred_check
        %p578 = pneg %p577
      $region74: #{tpu_custom_call.1} parent=5 // pred_check_branch
        %580 = sbr.rel (%p578) target = $region76
      $region75: #{tpu_custom_call.1} parent=5 // pred_region
        %s581 = ssub.s32 %s20, 2
        // Predicated region
        $region77: #{tpu_custom_call.1} parent=75 // pred_check
          %p582 = pneg %p243
        $region78: #{tpu_custom_call.1} parent=75 // pred_check_branch
          %584 = sbr.rel (%p582) target = $region80
        $region79: #{tpu_custom_call.1} parent=75 // pred_region
          %s585 = sand.u32 %s228, 1
          %s586 = scalar_lea.sflag [#allocation4], %s585
          %s587 = sand.u32 %s228, 1
          %s588 = smul.addr %s587, 4
          %s589 = scalar_lea.vmem [#allocation8], %s588
          %591 = dma.done %s586, 64
        $region80: #{tpu_custom_call.1} parent=75 // pred_fallthru
          _
      $region76: #{tpu_custom_call.1} parent=5 // pred_fallthru
        _
    $region6: #{tpu_custom_call.1} parent=1 // loop_footer
      %s24 = sadd.s32 1, %s20
    $region7: #{tpu_custom_call.1} parent=1 // loop_footer_branch
      %19 = sbr.rel target = $region3
    $region8: #{tpu_custom_call.1} parent=1 // loop_exit
      _
    %592 = vsyncpa [#allocation3], 1
    %s593 = scalar_lea.sflag [#allocation3], 1
    %594 = vsyncpa %s593, 1
    %595 = vsyncpa [#allocation6], 1
    %596 = vsyncpa [#allocation4], 1
    %s597 = scalar_lea.sflag [#allocation4], 1
    %598 = vsyncpa %s597, 1

// kernel: tpu_custom_call.1
$region0: #{tpu_custom_call.1}
  #allocation0 [shape = 'u32[]', space=smem, size = 0x4, offset = 0x4, fixed_abs, tag = 'smem constant byte address 0x4 - core index']
  #allocation1 [shape = 'u32[72,128]{1,0:T(1,128)}', space=vmem, size = 0x9000, scoped, tag = 'internal scratch']
  %s0 = inlined_call_operand.vmem [shape: f32[16,16], index: 0, kind: input, shape index: {}]
  %s1 = inlined_call_operand.vmem [shape: f32[1,16], index: 1, kind: input, shape index: {}]
  %s2 = inlined_call_operand.vmem [shape: f32[1,16], index: 2, kind: input, shape index: {}]
  %s3 = inlined_call_operand.hbm [shape: bf16[16,16], index: 3, kind: input, shape index: {}]
  %s4 = inlined_call_operand.hbm [shape: f32[1,16], index: 4, kind: input, shape index: {}]
  %s5 = inlined_call_operand.vmem [shape: bf16[16,4], index: 5, kind: input, shape index: {}]
  %s6 = inlined_call_operand.vmem [shape: bf16[16,4], index: 6, kind: input, shape index: {}]
  %s7 = inlined_call_operand.vmem [shape: bf16[8,16], index: 7, kind: input, shape index: {}]
  %s8 = inlined_call_operand.hbm [shape: f32[4,16], index: 8, kind: input, shape index: {}]
  %s9 = inlined_call_operand.hbm [shape: f32[2,4,16], index: 9, kind: output, shape index: {}]
  %s10 = sld [smem:[#allocation0]]
  $region81: #{tpu_custom_call.1} parent=0
    _
  %s12 = ssub.s32 1, %s10
  %s13 = scalar_select 0, %s12, %s10
  $region1: #{tpu_custom_call.1} parent=0
    #allocation2 [shape = 'u8[4096]{0}', space=vmem, size = 0x1000, scoped, tag = 'input window, operand 3, single buffered']
    #allocation3 [shape = 's32[2]{0}', space=sflag, size = 0x8, scoped, tag = 'scoped memory for tpu_custom_call.1']
    #allocation4 [shape = 's32[2]{0}', space=sflag, size = 0x8, scoped, tag = 'scoped memory for tpu_custom_call.1']
    #allocation5 [shape = 'u8[512]{0}', space=vmem, size = 0x400, scoped, tag = 'input window, operand 4, single buffered']
    #allocation6 [shape = 's32[1]{0}', space=sflag, size = 0x4, scoped, tag = 'scoped memory for tpu_custom_call.1']
    #allocation7 [shape = 'u8[2048]{0}', space=vmem, size = 0x800, scoped, tag = 'input window, operand 8, single buffered']
    #allocation8 [shape = 'u8[4096]{0}', space=vmem, size = 0x1000, scoped, tag = 'output window, operand 0']
    %14 = vsyncpa [#allocation3], 0
    %15 = vsyncpa [#allocation6], 0
    %16 = vsyncpa [#allocation4], 0
    %s17 = scalar_lea.sflag [#allocation4], 1
    %18 = vsyncpa %s17, 0
    loop: start=0, step=1, limit=4
    $region2: #{tpu_custom_call.1} parent=1 // loop_pre_header
      _
    $region3: #{tpu_custom_call.1} parent=1 // loop_header
      %s20 = sphi 0, %s24
      %p21 = scmp.ge.s32.totalorder %s20, 4
      %s30 = sphi 0, %s32
      %s33 = sphi 0, %s30
      %s34 = sphi 0, %s33
      %s50 = sphi 0, %s34
      %s54 = sphi 0, %s54
      %s56 = sphi 0, %s54
      %s57 = sphi 0, %s56
      %s71 = sphi 0, %s57
      %s75 = sphi 0, %s75
      %s77 = sphi 0, %s75
      %s78 = sphi 0, %s77
      %s92 = sphi 0, %s78
      %s96 = sphi 0, %s96
      %s98 = sphi 0, %s96
      %s99 = sphi 0, %s98
      %s113 = sphi 0, %s99
      %s117 = sphi 0, %s117
      %s119 = sphi 0, %s117
      %s120 = sphi 0, %s119
      %s134 = sphi 0, %s120
      %s138 = sphi 0, %s138
      %s140 = sphi 0, %s138
      %s141 = sphi 0, %s140
      %s155 = sphi 0, %s141
      %s159 = sphi 0, %s159
      %s161 = sphi 0, %s159
      %s162 = sphi 0, %s161
      %s176 = sphi 0, %s162
      %s180 = sphi 0, %s180
      %s182 = sphi 0, %s180
      %s183 = sphi 0, %s182
      %s197 = sphi 0, %s183
      %s201 = sphi 0, %s201
      %s203 = sphi 0, %s201
      %s204 = sphi 0, %s203
      %s218 = sphi 0, %s204
      %s224 = sphi 0, %s226
      %s227 = sphi 0, %s224
      %s228 = sphi 0, %s227
      %s244 = sphi 0, %s228
    $region4: #{tpu_custom_call.1} parent=1 // loop_header_branch
      %23 = sbr.rel (%p21) target = $region8
    $region5: #{tpu_custom_call.1} parent=1 // loop_body
      %s25 = ssub.s32 %s20, 1
      %s26 = ssub.s32 %s20, 2
      %s27 = sadd.s32 %s20, 1
      %s28 = ssub.s32 %s20, %s27
      %p29 = scmp.eq.s32.totalorder %s28, 0
      %s31 = sadd.s32 %s30, 1
      %s32 = scalar_select %p29, %s30, %s31
      %p35 = pneg %p29
      %p36 = scmp.eq.s32.totalorder %s20, 1
      %p37 = por %p35, %p36
      %p38 = scmp.ne.s32.totalorder %s30, %s33
      %p39 = scmp.eq.s32.totalorder %s20, 0
      %p40 = por %p38, %p39
      %p41 = scmp.ne.s32.totalorder %s30, %s33
      %p42 = scmp.eq.s32.totalorder %s25, 1
      %p43 = por %p41, %p42
      %p44 = scmp.ne.s32.totalorder %s33, %s34
      %p45 = scmp.eq.s32.totalorder %s25, 0
      %p46 = por %p44, %p45
      %p47 = scmp.ne.s32.totalorder %s33, %s34
      %p48 = scmp.eq.s32.totalorder %s26, 1
      %p49 = por %p47, %p48
      %p51 = scmp.ne.s32.totalorder %s34, %s50
      %p52 = scmp.eq.s32.totalorder %s26, 0
      %p53 = por %p51, %p52
      %s55 = sadd.s32 %s54, 1
      %p58 = scmp.eq.s32.totalorder %s20, 1
      %p59 = scmp.ne.s32.totalorder %s54, %s56
      %p60 = scmp.eq.s32.totalorder %s20, 0
      %p61 = por %p59, %p60
      %p62 = scmp.ne.s32.totalorder %s54, %s56
      %p63 = scmp.eq.s32.totalorder %s25, 1
      %p64 = por %p62, %p63
      %p65 = scmp.ne.s32.totalorder %s56, %s57
      %p66 = scmp.eq.s32.totalorder %s25, 0
      %p67 = por %p65, %p66
      %p68 = scmp.ne.s32.totalorder %s56, %s57
      %p69 = scmp.eq.s32.totalorder %s26, 1
      %p70 = por %p68, %p69
      %p72 = scmp.ne.s32.totalorder %s57, %s71
      %p73 = scmp.eq.s32.totalorder %s26, 0
      %p74 = por %p72, %p73
      %s76 = sadd.s32 %s75, 1
      %p79 = scmp.eq.s32.totalorder %s20, 1
      %p80 = scmp.ne.s32.totalorder %s75, %s77
      %p81 = scmp.eq.s32.totalorder %s20, 0
      %p82 = por %p80, %p81
      %p83 = scmp.ne.s32.totalorder %s75, %s77
      %p84 = scmp.eq.s32.totalorder %s25, 1
      %p85 = por %p83, %p84
      %p86 = scmp.ne.s32.totalorder %s77, %s78
      %p87 = scmp.eq.s32.totalorder %s25, 0
      %p88 = por %p86, %p87
      %p89 = scmp.ne.s32.totalorder %s77, %s78
      %p90 = scmp.eq.s32.totalorder %s26, 1
      %p91 = por %p89, %p90
      %p93 = scmp.ne.s32.totalorder %s78, %s92
      %p94 = scmp.eq.s32.totalorder %s26, 0
      %p95 = por %p93, %p94
      %s97 = sadd.s32 %s96, 1
      %p100 = scmp.eq.s32.totalorder %s20, 1
      %p101 = scmp.ne.s32.totalorder %s96, %s98
      %p102 = scmp.eq.s32.totalorder %s20, 0
      %p103 = por %p101, %p102
      %p104 = scmp.ne.s32.totalorder %s96, %s98
      %p105 = scmp.eq.s32.totalorder %s25, 1
      %p106 = por %p104, %p105
      %p107 = scmp.ne.s32.totalorder %s98, %s99
      %p108 = scmp.eq.s32.totalorder %s25, 0
      %p109 = por %p107, %p108
      %p110 = scmp.ne.s32.totalorder %s98, %s99
      %p111 = scmp.eq.s32.totalorder %s26, 1
      %p112 = por %p110, %p111
      %p114 = scmp.ne.s32.totalorder %s99, %s113
      %p115 = scmp.eq.s32.totalorder %s26, 0
      %p116 = por %p114, %p115
      %s118 = sadd.s32 %s117, 1
      %p121 = scmp.eq.s32.totalorder %s20, 1
      %p122 = scmp.ne.s32.totalorder %s117, %s119
      %p123 = scmp.eq.s32.totalorder %s20, 0
      %p124 = por %p122, %p123
      %p125 = scmp.ne.s32.totalorder %s117, %s119
      %p126 = scmp.eq.s32.totalorder %s25, 1
      %p127 = por %p125, %p126
      %p128 = scmp.ne.s32.totalorder %s119, %s120
      %p129 = scmp.eq.s32.totalorder %s25, 0
      %p130 = por %p128, %p129
      %p131 = scmp.ne.s32.totalorder %s119, %s120
      %p132 = scmp.eq.s32.totalorder %s26, 1
      %p133 = por %p131, %p132
      %p135 = scmp.ne.s32.totalorder %s120, %s134
      %p136 = scmp.eq.s32.totalorder %s26, 0
      %p137 = por %p135, %p136
      %s139 = sadd.s32 %s138, 1
      %p142 = scmp.eq.s32.totalorder %s20, 1
      %p143 = scmp.ne.s32.totalorder %s138, %s140
      %p144 = scmp.eq.s32.totalorder %s20, 0
      %p145 = por %p143, %p144
      %p146 = scmp.ne.s32.totalorder %s138, %s140
      %p147 = scmp.eq.s32.totalorder %s25, 1
      %p148 = por %p146, %p147
      %p149 = scmp.ne.s32.totalorder %s140, %s141
      %p150 = scmp.eq.s32.totalorder %s25, 0
      %p151 = por %p149, %p150
      %p152 = scmp.ne.s32.totalorder %s140, %s141
      %p153 = scmp.eq.s32.totalorder %s26, 1
      %p154 = por %p152, %p153
      %p156 = scmp.ne.s32.totalorder %s141, %s155
      %p157 = scmp.eq.s32.totalorder %s26, 0
      %p158 = por %p156, %p157
      %s160 = sadd.s32 %s159, 1
      %p163 = scmp.eq.s32.totalorder %s20, 1
      %p164 = scmp.ne.s32.totalorder %s159, %s161
      %p165 = scmp.eq.s32.totalorder %s20, 0
      %p166 = por %p164, %p165
      %p167 = scmp.ne.s32.totalorder %s159, %s161
      %p168 = scmp.eq.s32.totalorder %s25, 1
      %p169 = por %p167, %p168
      %p170 = scmp.ne.s32.totalorder %s161, %s162
      %p171 = scmp.eq.s32.totalorder %s25, 0
      %p172 = por %p170, %p171
      %p173 = scmp.ne.s32.totalorder %s161, %s162
      %p174 = scmp.eq.s32.totalorder %s26, 1
      %p175 = por %p173, %p174
      %p177 = scmp.ne.s32.totalorder %s162, %s176
      %p178 = scmp.eq.s32.totalorder %s26, 0
      %p179 = por %p177, %p178
      %s181 = sadd.s32 %s180, 1
      %p184 = scmp.eq.s32.totalorder %s20, 1
      %p185 = scmp.ne.s32.totalorder %s180, %s182
      %p186 = scmp.eq.s32.totalorder %s20, 0
      %p187 = por %p185, %p186
      %p188 = scmp.ne.s32.totalorder %s180, %s182
      %p189 = scmp.eq.s32.totalorder %s25, 1
      %p190 = por %p188, %p189
      %p191 = scmp.ne.s32.totalorder %s182, %s183
      %p192 = scmp.eq.s32.totalorder %s25, 0
      %p193 = por %p191, %p192
      %p194 = scmp.ne.s32.totalorder %s182, %s183
      %p195 = scmp.eq.s32.totalorder %s26, 1
      %p196 = por %p194, %p195
      %p198 = scmp.ne.s32.totalorder %s183, %s197
      %p199 = scmp.eq.s32.totalorder %s26, 0
      %p200 = por %p198, %p199
      %s202 = sadd.s32 %s201, 1
      %p205 = scmp.eq.s32.totalorder %s20, 1
      %p206 = scmp.ne.s32.totalorder %s201, %s203
      %p207 = scmp.eq.s32.totalorder %s20, 0
      %p208 = por %p206, %p207
      %p209 = scmp.ne.s32.totalorder %s201, %s203
      %p210 = scmp.eq.s32.totalorder %s25, 1
      %p211 = por %p209, %p210
      %p212 = scmp.ne.s32.totalorder %s203, %s204
      %p213 = scmp.eq.s32.totalorder %s25, 0
      %p214 = por %p212, %p213
      %p215 = scmp.ne.s32.totalorder %s203, %s204
      %p216 = scmp.eq.s32.totalorder %s26, 1
      %p217 = por %p215, %p216
      %p219 = scmp.ne.s32.totalorder %s204, %s218
      %p220 = scmp.eq.s32.totalorder %s26, 0
      %p221 = por %p219, %p220
      %s222 = ssub.s32 %s20, %s27
      %p223 = scmp.eq.s32.totalorder %s222, 0
      %s225 = sadd.s32 %s224, 1
      %s226 = scalar_select %p223, %s224, %s225
      %p229 = pneg %p223
      %p230 = scmp.eq.s32.totalorder %s20, 1
      %p231 = por %p229, %p230
      %p232 = scmp.ne.s32.totalorder %s224, %s227
      %p233 = scmp.eq.s32.totalorder %s20, 0
      %p234 = por %p232, %p233
      %p235 = scmp.ne.s32.totalorder %s224, %s227
      %p236 = scmp.eq.s32.totalorder %s25, 1
      %p237 = por %p235, %p236
      %p238 = scmp.ne.s32.totalorder %s227, %s228
      %p239 = scmp.eq.s32.totalorder %s25, 0
      %p240 = por %p238, %p239
      %p241 = scmp.ne.s32.totalorder %s227, %s228
      %p242 = scmp.eq.s32.totalorder %s26, 1
      %p243 = por %p241, %p242
      %p245 = scmp.ne.s32.totalorder %s228, %s244
      %p246 = scmp.eq.s32.totalorder %s26, 0
      %p247 = por %p245, %p246
      %p248 = scmp.le.s32.totalorder 1, %s20
      %p249 = scmp.lt.s32.totalorder %s20, 3
      %p250 = pnand %p248, %p249
      %p251 = pneg %p250
      // Predicated region
      $region9: #{tpu_custom_call.1} parent=5 // pred_check
        _
      $region10: #{tpu_custom_call.1} parent=5 // pred_check_branch
        %253 = sbr.rel (%p250) target = $region12
      $region11: #{tpu_custom_call.1} parent=5 // pred_region
        %s254 = ssub.s32 %s20, 1
        // Predicated region
        $region13: #{tpu_custom_call.1} parent=11 // pred_check
          %p255 = pneg %p67
        $region14: #{tpu_custom_call.1} parent=11 // pred_check_branch
          %257 = sbr.rel (%p255) target = $region16
        $region15: #{tpu_custom_call.1} parent=11 // pred_region
          _
        $region16: #{tpu_custom_call.1} parent=11 // pred_fallthru
          _
        // Predicated region
        $region17: #{tpu_custom_call.1} parent=11 // pred_check
          %p258 = pneg %p88
        $region18: #{tpu_custom_call.1} parent=11 // pred_check_branch
          %260 = sbr.rel (%p258) target = $region20
        $region19: #{tpu_custom_call.1} parent=11 // pred_region
          _
        $region20: #{tpu_custom_call.1} parent=11 // pred_fallthru
          _
        // Predicated region
        $region21: #{tpu_custom_call.1} parent=11 // pred_check
          %p261 = pneg %p109
        $region22: #{tpu_custom_call.1} parent=11 // pred_check_branch
          %263 = sbr.rel (%p261) target = $region24
        $region23: #{tpu_custom_call.1} parent=11 // pred_region
          %265 = vsyncadd [#allocation3], 0
          %s266 = sshll.u32 %s3, 4
          %s267 = int_to_ptr.hbm [resolvable:$true] %s266
          %s268 = sshll.u32 [#allocation2], 4
          %s269 = int_to_ptr.vmem [resolvable:$true] %s268
          %274 = dma.hbm_to_vmem [thread:$0]  %s267, 128, %s269, [#allocation3], 64, 64, 4
        $region24: #{tpu_custom_call.1} parent=11 // pred_fallthru
          _
        // Predicated region
        $region25: #{tpu_custom_call.1} parent=11 // pred_check
          %p275 = pneg %p130
        $region26: #{tpu_custom_call.1} parent=11 // pred_check_branch
          %277 = sbr.rel (%p275) target = $region28
        $region27: #{tpu_custom_call.1} parent=11 // pred_region
          %279 = vsyncadd [#allocation6], 0
          %s281 = sshll.u32 %s4, 4
          %s282 = int_to_ptr.hbm [resolvable:$true] %s281
          %s283 = sshll.u32 [#allocation5], 4
          %s284 = int_to_ptr.vmem [resolvable:$true] %s283
          %286 = dma.hbm_to_vmem [thread:$0]  %s282, 16, %s284, [#allocation6]
        $region28: #{tpu_custom_call.1} parent=11 // pred_fallthru
          _
        // Predicated region
        $region29: #{tpu_custom_call.1} parent=11 // pred_check
          %p287 = pneg %p151
        $region30: #{tpu_custom_call.1} parent=11 // pred_check_branch
          %289 = sbr.rel (%p287) target = $region32
        $region31: #{tpu_custom_call.1} parent=11 // pred_region
          _
        $region32: #{tpu_custom_call.1} parent=11 // pred_fallthru
          _
        // Predicated region
        $region33: #{tpu_custom_call.1} parent=11 // pred_check
          %p290 = pneg %p172
        $region34: #{tpu_custom_call.1} parent=11 // pred_check_branch
          %292 = sbr.rel (%p290) target = $region36
        $region35: #{tpu_custom_call.1} parent=11 // pred_region
          _
        $region36: #{tpu_custom_call.1} parent=11 // pred_fallthru
          _
        // Predicated region
        $region37: #{tpu_custom_call.1} parent=11 // pred_check
          %p293 = pneg %p193
        $region38: #{tpu_custom_call.1} parent=11 // pred_check_branch
          %295 = sbr.rel (%p293) target = $region40
        $region39: #{tpu_custom_call.1} parent=11 // pred_region
          _
        $region40: #{tpu_custom_call.1} parent=11 // pred_fallthru
          _
        // Predicated region
        $region41: #{tpu_custom_call.1} parent=11 // pred_check
          %p296 = pneg %p214
        $region42: #{tpu_custom_call.1} parent=11 // pred_check_branch
          %298 = sbr.rel (%p296) target = $region44
        $region43: #{tpu_custom_call.1} parent=11 // pred_region
          %300 = vsyncadd [#allocation6], 0
          %s302 = sshll.u32 %s8, 4
          %s303 = int_to_ptr.hbm [resolvable:$true] %s302
          %s304 = sshll.u32 [#allocation7], 4
          %s305 = int_to_ptr.vmem [resolvable:$true] %s304
          %307 = dma.hbm_to_vmem [thread:$0]  %s303, 64, %s305, [#allocation6]
        $region44: #{tpu_custom_call.1} parent=11 // pred_fallthru
          _
      $region12: #{tpu_custom_call.1} parent=5 // pred_fallthru
        _
      %p308 = scmp.lt.s32.totalorder %s20, 2
      // Predicated region
      $region45: #{tpu_custom_call.1} parent=5 // pred_check
        %p309 = pneg %p308
      $region46: #{tpu_custom_call.1} parent=5 // pred_check_branch
        %311 = sbr.rel (%p309) target = $region48
      $region47: #{tpu_custom_call.1} parent=5 // pred_region
        // Predicated region
        $region49: #{tpu_custom_call.1} parent=47 // pred_check
          %p312 = pneg %p40
        $region50: #{tpu_custom_call.1} parent=47 // pred_check_branch
          %314 = sbr.rel (%p312) target = $region52
        $region51: #{tpu_custom_call.1} parent=47 // pred_region
          %p315 = scmp.lt.s32.totalorder %s20, 1
          %s316 = scalar_select %p315, %s20, 1
          %s317 = smul.addr %s316, 8
          %s318 = scalar_lea.vmem %s0, %s317
        $region52: #{tpu_custom_call.1} parent=47 // pred_fallthru
          _
      $region48: #{tpu_custom_call.1} parent=5 // pred_fallthru
        _
      %p319 = scmp.le.s32.totalorder 1, %s20
      %p320 = scmp.lt.s32.totalorder %s20, 3
      %p321 = pnand %p319, %p320
      %p322 = pneg %p321
      // Predicated region
      $region53: #{tpu_custom_call.1} parent=5 // pred_check
        _
      $region54: #{tpu_custom_call.1} parent=5 // pred_check_branch
        %324 = sbr.rel (%p321) target = $region56
      $region55: #{tpu_custom_call.1} parent=5 // pred_region
        %s325 = ssub.s32 %s20, 1
        // Predicated region
        $region57: #{tpu_custom_call.1} parent=55 // pred_check
          %p326 = pneg %p109
        $region58: #{tpu_custom_call.1} parent=55 // pred_check_branch
          %328 = sbr.rel (%p326) target = $region60
        $region59: #{tpu_custom_call.1} parent=55 // pred_region
          %330 = dma.done [#allocation3], 128
        $region60: #{tpu_custom_call.1} parent=55 // pred_fallthru
          _
        // Predicated region
        $region61: #{tpu_custom_call.1} parent=55 // pred_check
          %p331 = pneg %p130
        $region62: #{tpu_custom_call.1} parent=55 // pred_check_branch
          %333 = sbr.rel (%p331) target = $region64
        $region63: #{tpu_custom_call.1} parent=55 // pred_region
          %335 = dma.done [#allocation6], 16
        $region64: #{tpu_custom_call.1} parent=55 // pred_fallthru
          _
        // Predicated region
        $region65: #{tpu_custom_call.1} parent=55 // pred_check
          %p336 = pneg %p214
        $region66: #{tpu_custom_call.1} parent=55 // pred_check_branch
          %338 = sbr.rel (%p336) target = $region68
        $region67: #{tpu_custom_call.1} parent=55 // pred_region
          %340 = dma.done [#allocation6], 64
        $region68: #{tpu_custom_call.1} parent=55 // pred_fallthru
          _
        %p341 = scmp.lt.s32.totalorder %s25, 1
        %s342 = scalar_select %p341, %s25, 1
        %s343 = smul.addr %s342, 8
        %s344 = scalar_lea.vmem %s0, %s343
        %p345 = pneg %p46
        %p346 = pneg %p43
        %p347 = pneg %p67
        %p348 = pneg %p64
        %p349 = pneg %p88
        %p350 = pneg %p85
        %p351 = pneg %p109
        %p352 = pneg %p106
        %p353 = pneg %p130
        %p354 = pneg %p127
        %p355 = pneg %p151
        %p356 = pneg %p148
        %p357 = pneg %p172
        %p358 = pneg %p169
        %p359 = pneg %p193
        %p360 = pneg %p190
        %p361 = pneg %p214
        %p362 = pneg %p211
        %p363 = pneg %p240
        %p364 = pneg %p237
        %s365 = sand.u32 %s227, 1
        %s366 = scalar_lea.sflag [#allocation4], %s365
        %s367 = sand.u32 %s227, 1
        %s368 = smul.addr %s367, 4
        %s369 = scalar_lea.vmem [#allocation8], %s368
        %p370 = scmp.lt.s32.totalorder %s25, 1
        %s371 = scalar_select %p370, %s25, 1
        %s372 = smul.addr %s371, 8
        %s373 = scalar_lea.vmem %s0, %s372
        %v375 = vld [vmem:[%s373] sm:$0xff]
        %vm376 = vcmask 130048
        %v377 = vsel %vm376, %v375, 0.0
        %378 = vadd.xlane.f32.xlu0 %v377
        %v379 = vpop.xlane.xlu0 %378
        %v380 = vmul.f32 %v375, %v375
        %v381 = vsel %vm376, %v380, 0.0
        %382 = vadd.xlane.f32.xlu0 %v381
        %v383 = vpop.xlane.xlu0 %382
        %v384 = vmul.f32 %v379, 0.0625
        %v385 = vmul.f32 %v383, 0.0625
        %v386 = vmul.f32 %v384, %v384
        %v387 = vsub.f32 %v385, %v386
        %v388 = vmax.f32 %v387, 0.0
        %v389 = vsub.f32 %v375, %v384
        %v390 = vadd.f32 %v388, 1e-05
        %v391 = vrsqrt.pop %v390
        %v392 = vmul.f32 %v391, %v390
        %v393 = vmul.f32 %v392, %v391
        %v394 = vmul.f32 0.5, %v393
        %v395 = vsub.f32 1.5, %v394
        %v396 = vmul.f32 %v391, %v395
        %vm397 = vweird.f32 %v390
        %vm398 = vweird.f32 %v391
        %vm399 = vmor %vm397, %vm398
        %v400 = vsel %vm399, %v391, %v396
        %v401 = vmul.f32 %v389, %v400
        %v402 = vld [vmem:[%s1] sm:$0x1]
        %v404 = vperm.slane %v402, 0
        %v406 = vmul.f32 %v401, %v404
        %v407 = vld [vmem:[%s2] sm:$0x1]
        %v409 = vperm.slane %v407, 0
        %v411 = vadd.f32 %v406, %v409
        %v412 = vpack.c.bf16 %v411, %v411
        %v413 = vld [vmem:[#allocation2] sm:$0xf]
        %v414 = vld [vmem:[#allocation2 + $0x4] sm:$0xf]
        %v415 = vld [vmem:[#allocation5] sm:$0x1]
        %v417 = vperm.slane %v415, 0
        %v421 = vunpack.c.l.b16 %v413
        %v422 = vunpack.c.l.b16 %v414
        %v423 = vpack.c.b16 %v422, %v421
        %v426 = vsel %vm376, %v412, 0
        %428 = vmatpush.bf16.msra.mxu0 0
        %429 = vmatpush.bf16.msra.mxu0 0
        %430 = vmatpush.bf16.msra.mxu0 0
        %431 = vmatpush.bf16.msra.mxu0 0
        %432 = vmatpush.bf16.msra.mxu0 0
        %433 = vmatpush.bf16.msra.mxu0 0
        %434 = vmatpush.bf16.msra.mxu0 0
        %435 = vmatpush.bf16.msra.mxu0 %v423
        %436 = vmatmul.bf16.gmra.mxu0 %v426
        %v437 = vpop.f32.mrf.mxu0
        %v438 = vadd.f32 %v417, %v437
        %v439 = vpop.f32.mrf.mxu0
        %440 = vdwg.mxu0
        %v441 = vmax.f32 %v438, 0.0
        %v442 = vpack.c.bf16 %v375, %v375
        %v443 = vld [vmem:[%s5] sm:$0xf]
        %v444 = vld [vmem:[%s5 + $0x4] sm:$0xf]
        %v445 = vpack.c.bf16 %v441, %v441
        %v446 = vld [vmem:[%s6] sm:$0xf]
        %v447 = vld [vmem:[%s6 + $0x4] sm:$0xf]
        %v450 = vunpack.c.l.b16 %v446
        %v451 = vunpack.c.l.b16 %v447
        %v452 = vpack.c.b16 %v451, %v450
        %v455 = vsel %vm376, %v445, 0
        %457 = vmatpush.bf16.msra.mxu0 0
        %458 = vmatpush.bf16.msra.mxu0 0
        %459 = vmatpush.bf16.msra.mxu0 0
        %460 = vmatpush.bf16.msra.mxu0 0
        %461 = vmatpush.bf16.msra.mxu0 0
        %462 = vmatpush.bf16.msra.mxu0 0
        %463 = vmatpush.bf16.msra.mxu0 0
        %464 = vmatpush.bf16.msra.mxu0 %v452
        %465 = vmatmul.bf16.gmra.mxu0 %v455
        %v466 = vpop.f32.mrf.mxu0
        %v467 = vadd.f32 0.0, %v466
        %v468 = vpop.f32.mrf.mxu0
        %469 = vdwg.mxu0
        %v472 = vunpack.c.l.b16 %v443
        %v473 = vunpack.c.l.b16 %v444
        %v474 = vpack.c.b16 %v473, %v472
        %v477 = vsel %vm376, %v442, 0
        %479 = vmatpush.bf16.msra.mxu0 0
        %480 = vmatpush.bf16.msra.mxu0 0
        %481 = vmatpush.bf16.msra.mxu0 0
        %482 = vmatpush.bf16.msra.mxu0 0
        %483 = vmatpush.bf16.msra.mxu0 0
        %484 = vmatpush.bf16.msra.mxu0 0
        %485 = vmatpush.bf16.msra.mxu0 0
        %486 = vmatpush.bf16.msra.mxu0 %v474
        %487 = vmatmul.bf16.gmra.mxu0 %v477
        %v488 = vpop.f32.mrf.mxu0
        %v489 = vadd.f32 %v467, %v488
        %v490 = vpop.f32.mrf.mxu0
        %491 = vdwg.mxu0
        %v492 = vpack.c.bf16 %v489, %v489
        %v493 = vld [vmem:[%s7] sm:$0xf]
        %494 = vxpose.xlu0.c.b16.start [1/8] %v492, 128
        %495 = vxpose.xlu0.c.b16.cont [2/8] 0, 128
        %496 = vxpose.xlu0.c.b16.cont [3/8] 0, 128
        %497 = vxpose.xlu0.c.b16.cont [4/8] 0, 128
        %498 = vxpose.xlu0.c.b16.cont [5/8] 0, 128
        %499 = vxpose.xlu0.c.b16.cont [6/8] 0, 128
        %500 = vxpose.xlu0.c.b16.cont [7/8] 0, 128
        %501 = vxpose.xlu0.c.b16.end [8/8] 0, 128
        %v502 = vpop.trf.xlu0
        %v503 = vpop.trf.xlu0
        %v504 = vpop.trf.xlu0
        %v505 = vpop.trf.xlu0
        %v506 = vpop.trf.xlu0
        %v507 = vpop.trf.xlu0
        %v508 = vpop.trf.xlu0
        %v509 = vpop.trf.xlu0
        %vm510 = vcmask 64512
        %v512 = vsel %vm510, %v502, 0
        %vm514 = vcmask 1043456
        %v516 = vsel %vm514, %v493, 0
        %518 = vmatpush.bf16.msra.mxu0 0
        %519 = vmatpush.bf16.msra.mxu0 0
        %520 = vmatpush.bf16.msra.mxu0 0
        %521 = vmatpush.bf16.msra.mxu0 0
        %522 = vmatpush.bf16.msra.mxu0 0
        %523 = vmatpush.bf16.msra.mxu0 0
        %524 = vmatpush.bf16.msra.mxu0 0
        %525 = vmatpush.bf16.msra.mxu0 %v516
        %526 = vmatmul.bf16.gmra.mxu0 %v512
        %v527 = vpop.f32.mrf.mxu0
        %v528 = vadd.f32 0.0, %v527
        %v529 = vpop.f32.mrf.mxu0
        %530 = vdwg.mxu0
        %v531 = vld [vmem:[#allocation7] sm:$0xf]
        %v532 = vadd.f32 %v528, %v531
        %v533 = vmul.f32 %v532, %v532
        %vm534 = vcmask 125952
        %v535 = vsel %vm534, %v533, 0.0
        %536 = vadd.xlane.f32.xlu0 %v535
        %v537 = vpop.xlane.xlu0 %536
        %v538 = vsel %vm514, %v537, 0.0
        %v539 = vrot.slane %v538, 4
        %v540 = vadd.f32 %v538, %v539
        %v541 = vrot.slane %v540, 2
        %v542 = vadd.f32 %v540, %v541
        %v543 = vrot.slane %v542, 1
        %v544 = vadd.f32 %v542, %v543
        %v545 = vmax.f32 %v544, 1e-24
        %v546 = vrsqrt.pop %v545
        %v547 = vmul.f32 %v546, %v545
        %v548 = vmul.f32 %v547, %v546
        %v549 = vmul.f32 0.5, %v548
        %v550 = vsub.f32 1.5, %v549
        %v551 = vmul.f32 %v546, %v550
        %vm552 = vweird.f32 %v545
        %vm553 = vweird.f32 %v546
        %vm554 = vmor %vm552, %vm553
        %v555 = vsel %vm554, %v546, %v551
        %v556 = vmul.f32 %v532, %v555
        %557 = vst.msk [vmem:[%s369] sm:$0xf] %vm534, %v556
        %s558 = sand.u32 %s227, 1
        %s559 = scalar_lea.sflag [#allocation4], %s558
        %s560 = sand.u32 %s227, 1
        %s561 = smul.addr %s560, 4
        %s562 = scalar_lea.vmem [#allocation8], %s561
        // Predicated region
        $region69: #{tpu_custom_call.1} parent=55 // pred_check
          %p563 = pneg %p237
        $region70: #{tpu_custom_call.1} parent=55 // pred_check_branch
          %565 = sbr.rel (%p563) target = $region72
        $region71: #{tpu_custom_call.1} parent=55 // pred_region
          %567 = vsyncadd %s559, 0
          %s568 = smul.addr %s25, 4
          %s569 = scalar_lea.hbm %s9, %s568
          %s571 = sshll.u32 %s562, 4
          %s572 = int_to_ptr.vmem [resolvable:$true] %s571
          %s573 = sshll.u32 %s569, 4
          %s574 = int_to_ptr.hbm [resolvable:$true] %s573
          %576 = dma.vmem_to_hbm [thread:$0]  %s572, 64, %s574, %s559
        $region72: #{tpu_custom_call.1} parent=55 // pred_fallthru
          _
      $region56: #{tpu_custom_call.1} parent=5 // pred_fallthru
        _
      %p577 = scmp.le.s32.totalorder 2, %s20
      // Predicated region
      $region73: #{tpu_custom_call.1} parent=5 // pred_check
        %p578 = pneg %p577
      $region74: #{tpu_custom_call.1} parent=5 // pred_check_branch
        %580 = sbr.rel (%p578) target = $region76
      $region75: #{tpu_custom_call.1} parent=5 // pred_region
        %s581 = ssub.s32 %s20, 2
        // Predicated region
        $region77: #{tpu_custom_call.1} parent=75 // pred_check
          %p582 = pneg %p243
        $region78: #{tpu_custom_call.1} parent=75 // pred_check_branch
          %584 = sbr.rel (%p582) target = $region80
        $region79: #{tpu_custom_call.1} parent=75 // pred_region
          %s585 = sand.u32 %s228, 1
          %s586 = scalar_lea.sflag [#allocation4], %s585
          %s587 = sand.u32 %s228, 1
          %s588 = smul.addr %s587, 4
          %s589 = scalar_lea.vmem [#allocation8], %s588
          %591 = dma.done %s586, 64
        $region80: #{tpu_custom_call.1} parent=75 // pred_fallthru
          _
      $region76: #{tpu_custom_call.1} parent=5 // pred_fallthru
        _
    $region6: #{tpu_custom_call.1} parent=1 // loop_footer
      %s24 = sadd.s32 1, %s20
    $region7: #{tpu_custom_call.1} parent=1 // loop_footer_branch
      %19 = sbr.rel target = $region3
    $region8: #{tpu_custom_call.1} parent=1 // loop_exit
      _
    %592 = vsyncpa [#allocation3], 1
    %s593 = scalar_lea.sflag [#allocation3], 1
    %594 = vsyncpa %s593, 1
    %595 = vsyncpa [#allocation6], 1
    %596 = vsyncpa [#allocation4], 1
    %s597 = scalar_lea.sflag [#allocation4], 1
    %598 = vsyncpa %s597, 1

</llo_original>
